<compile_context>
chip_gen: v5e
topology: v5e:2x2
jax: 0.10.0
libtpu: 0.0.40
codegen_flags: <defaults>
</compile_context>

<pallas_src>
import jax
import jax.numpy as jnp
from jax.experimental import pallas as pl
from jax.experimental.pallas import tpu as pltpu


def _round_up(x, m):
    return (x + m - 1) // m * m


def _fm_kernel(x_ref, w1_ref, w2_ref, lin_ref, part_ref):
    """One independent row tile of the FM layer.

    x_ref    : (TR, D)     row tile of x (natural layout, streamed from HBM)
    w1_ref   : (D+1, D)    [V^T ; w_lin]  (resident across the grid)
    w2_ref   : (D, D)      (V^T)^2        (resident across the grid)
    lin_ref  : (1, TR)     lane-dense per-row linear term (pre-bias)
    part_ref : (1, 8, 128) per-tile partial interaction sum (value broadcast)
    """
    x = x_ref[...]                                   # (TR, D)
    xsq = x * x
    D = w2_ref.shape[0]

    # Weights on the left, contracted against the LAST dim of the x tile
    # (i.e. W @ x^T).  The MXU handles the transposed operand directly, so no
    # explicit transpose of the big tile is materialized.
    #   rows [0, D) of res : (x @ V)^T
    #   row   D     of res : (x @ w_lin^T)^T == linear term, already lane-dense
    res = jax.lax.dot_general(
        w1_ref[...], x, (((1,), (1,)), ((), ())),
        preferred_element_type=jnp.float32)          # (D+1, TR) f32
    x2v2 = jax.lax.dot_general(
        w2_ref[...], xsq, (((1,), (1,)), ((), ())),
        preferred_element_type=jnp.float32)          # (D, TR)  f32

    xv = res[:D, :]                                  # (D, TR)
    lin_ref[...] = res[D:D + 1, :]                   # lane-dense (1, TR) store

    part = jnp.sum(0.5 * x2v2 - xv * xv, keepdims=True)   # (1, 1) f32
    part_ref[...] = jnp.broadcast_to(part, part_ref.shape)


def fm_forward(params, x, *, compute_dtype=jnp.float32, row_tile_cap=2048):
    """FM_Layer.forward.  x: (B, M, 2n) -> rate: (B, M, 1) float32."""
    B, M, D = x.shape
    R = B * M

    V = params["V"].astype(jnp.float32)
    wl = params["lin_w"].astype(jnp.float32).reshape(1, D)
    bl = params["lin_b"].astype(jnp.float32).reshape(())

    # Parameter-only packing (independent of batch size, no batch-scaled copies).
    w1 = jnp.concatenate([V.T, wl], axis=0)          # (D+1, D): V^T rows + linear weight
    w2 = V.T * V.T                                   # (D, D):   (V^T)^2

    # Lane-aligned row tiles.  Pad rows only when required; padded rows are zero
    # and contribute exactly 0 to both the linear term and the interaction sum.
    TR = max(128, min(row_tile_cap, _round_up(R, 128)))
    R_pad = _round_up(R, TR)
    T = R_pad // TR

    xf = x.reshape(R, D)                             # free reshape, NO transpose
    if R_pad != R:
        xf = jnp.pad(xf, ((0, R_pad - R), (0, 0)))

    # Optional low-precision streaming (halves x HBM bytes when x is already
    # bf16 upstream); accumulation inside the kernel stays f32.
    xf = xf.astype(compute_dtype)
    w1 = w1.astype(compute_dtype)
    w2 = w2.astype(compute_dtype)

    lin, partials = pl.pallas_call(
        _fm_kernel,
        out_shape=(
            jax.ShapeDtypeStruct((1, R_pad), jnp.float32),     # lane-dense linear term
            jax.ShapeDtypeStruct((T, 8, 128), jnp.float32),    # per-tile partial sums
        ),
        grid=(T,),
        in_specs=[
            pl.BlockSpec((TR, D), lambda t: (t, 0)),           # stream x row tiles
            pl.BlockSpec((D + 1, D), lambda t: (0, 0)),        # resident weights
            pl.BlockSpec((D, D), lambda t: (0, 0)),            # resident weights
        ],
        out_specs=(
            pl.BlockSpec((1, TR), lambda t: (0, t)),
            pl.BlockSpec((1, 8, 128), lambda t: (t, 0, 0)),
        ),
        compiler_params=pltpu.CompilerParams(
            # Row tiles are fully independent (per-tile partial sums are combined
            # in the wrapper), so the axis can be split across TensorCores on
            # v7x.  No batch-scaled VMEM buffers remain, so the default scoped
            # VMEM limit is sufficient on every generation.
            dimension_semantics=("parallel",),
        ),
    )(xf, w1, w2)

    s = jnp.sum(partials[:, 0, 0])                   # batch-global interaction sum
    rate = lin[0, :R] + (bl + s)                     # bias + global offset in wrapper
    return rate.reshape(B, M, 1)


def fm_reference(params, x):
    """Pure-JAX reference implementing FM_Layer.forward verbatim."""
    V = params["V"]
    wl = params["lin_w"]
    bl = params["lin_b"]
    linear_part = jnp.einsum("bmd,od->bmo", x, wl) + bl        # (B, M, 1)
    ip1 = jnp.einsum("bmd,dj->bmj", x, V)                      # bmm(x, V)
    ip2 = jnp.einsum("bmd,dj->bmj", x * x, V * V)              # bmm(x^2, V^2)
    s = jnp.sum(0.5 * ip2 - ip1 * ip1)                         # global scalar
    return linear_part + s


def init_params(key, n):
    D = 2 * n
    k1, k2, k3 = jax.random.split(key, 3)
    bound = 1.0 / float(D) ** 0.5
    return {
        # nn.Linear(2n, 1): weight (1, 2n), bias (1,)
        "lin_w": jax.random.uniform(k1, (1, D), jnp.float32, -bound, bound),
        "lin_b": jax.random.uniform(k2, (1,), jnp.float32, -bound, bound),
        # The torch module initializes self.V to zeros; small random values are
        # used here so the interaction term is numerically exercised (the
        # forward math is identical).
        "V": 0.05 * jax.random.normal(k3, (D, D), jnp.float32),
    }


if __name__ == "__main__":
    key = jax.random.PRNGKey(0)
    kp, kx = jax.random.split(key)

    n = 16                    # args.n  -> feature dim 2n = 32
    B, M = 2, 2048            # R = 4096 rows -> 2 row tiles of 2048
    D = 2 * n

    params = init_params(kp, n)
    x = jax.random.normal(kx, (B, M, D), jnp.float32)

    # f32 path (strict correctness check).
    rate = fm_forward(params, x)
    jax.block_until_ready(rate)
    assert rate.shape == (B, M, 1)

    ref = fm_reference(params, x)
    rel = float(jnp.max(jnp.abs(rate - ref)) / (jnp.max(jnp.abs(ref)) + 1e-6))
    assert rel < 3e-3, f"global mismatch: rel={rel}"
    row = float(jnp.max(jnp.abs((rate - jnp.mean(rate)) - (ref - jnp.mean(ref)))))
    assert row < 5e-2, f"per-row mismatch: {row}"

    # Non-tile-divisible row count exercises the zero-padding path.
    x2 = jax.random.normal(jax.random.PRNGKey(1), (3, 700, D), jnp.float32)
    rate2 = fm_forward(params, x2)
    jax.block_until_ready(rate2)
    assert rate2.shape == (3, 700, 1)
    ref2 = fm_reference(params, x2)
    rel2 = float(jnp.max(jnp.abs(rate2 - ref2)) / (jnp.max(jnp.abs(ref2)) + 1e-6))
    assert rel2 < 3e-3, f"padded-path mismatch: rel={rel2}"

    # bf16-streaming path (v5e/v6e HBM lever).  The batch-global sum is
    # cancellation-prone at bf16, so only the per-row structure is checked
    # loosely here; accumulation inside the kernel stays f32.
    rate_bf16 = fm_forward(params, x, compute_dtype=jnp.bfloat16)
    jax.block_until_ready(rate_bf16)
    assert rate_bf16.shape == (B, M, 1)
    assert bool(jnp.all(jnp.isfinite(rate_bf16)))
    row_bf16 = float(jnp.max(jnp.abs(
        (rate_bf16 - jnp.mean(rate_bf16)) - (ref - jnp.mean(ref)))))
    assert row_bf16 < 0.5, f"bf16 per-row mismatch: {row_bf16}"

    print("KERNEL_OK")
</pallas_src>

<mosaic_0001>
module attributes {stable_mosaic.version = 11 : i64} {
  func.func @_fm_kernel(%arg0: i32, %arg1: memref<2048x32xf32, #tpu.memory_space<vmem>>, %arg2: memref<33x32xf32, #tpu.memory_space<vmem>>, %arg3: memref<32x32xf32, #tpu.memory_space<vmem>>, %arg4: memref<1x2048xf32, #tpu.memory_space<vmem>>, %arg5: memref<1x8x128xf32, #tpu.memory_space<vmem>>) attributes {dimension_semantics = [#tpu.dimension_semantics<parallel>], iteration_bounds = array<i64: 2>, scalar_prefetch = 0 : i64, scratch_operands = 0 : i64, tpu.core_type = #tpu.core_type<tc>, window_params = [{transform_indices = @transform_0, window_bounds = array<i64: 2048, 32>}, {pipeline_mode = #tpu.pipeline_mode<synchronous>, transform_indices = @transform_1, window_bounds = array<i64: 33, 32>}, {pipeline_mode = #tpu.pipeline_mode<synchronous>, transform_indices = @transform_2, window_bounds = array<i64: 32, 32>}, {transform_indices = @transform_3, window_bounds = array<i64: 1, 2048>}, {transform_indices = @transform_4, window_bounds = array<i64: 1, 8, 128>}]} {
    %c0 = arith.constant 0 : index
    %c0_0 = arith.constant 0 : index
    %0 = vector.load %arg1[%c0, %c0_0] : memref<2048x32xf32, #tpu.memory_space<vmem>>, vector<2048x32xf32>
    %1 = arith.mulf %0, %0 : vector<2048x32xf32>
    %c0_1 = arith.constant 0 : index
    %c0_2 = arith.constant 0 : index
    %2 = vector.load %arg2[%c0_1, %c0_2] : memref<33x32xf32, #tpu.memory_space<vmem>>, vector<33x32xf32>
    %cst = arith.constant dense<0.000000e+00> : vector<33x2048xf32>
    %3 = tpu.matmul %2, %0, %cst {dimension_numbers = #tpu.dot_dimension_numbers<[1], [1], [0], [0], [0, 0, 1, 0], [], []>} : vector<33x32xf32>, vector<2048x32xf32>, vector<33x2048xf32> -> vector<33x2048xf32>
    %c0_3 = arith.constant 0 : index
    %c0_4 = arith.constant 0 : index
    %4 = vector.load %arg3[%c0_3, %c0_4] : memref<32x32xf32, #tpu.memory_space<vmem>>, vector<32x32xf32>
    %cst_5 = arith.constant dense<0.000000e+00> : vector<32x2048xf32>
    %5 = tpu.matmul %4, %1, %cst_5 {dimension_numbers = #tpu.dot_dimension_numbers<[1], [1], [0], [0], [0, 0, 1, 0], [], []>} : vector<32x32xf32>, vector<2048x32xf32>, vector<32x2048xf32> -> vector<32x2048xf32>
    %6 = vector.extract_strided_slice %3 {offsets = [0, 0], sizes = [32, 2048], strides = [1, 1]} : vector<33x2048xf32> to vector<32x2048xf32>
    %7 = vector.extract_strided_slice %3 {offsets = [32, 0], sizes = [1, 2048], strides = [1, 1]} : vector<33x2048xf32> to vector<1x2048xf32>
    %c0_6 = arith.constant 0 : index
    %c0_7 = arith.constant 0 : index
    %8 = vector.load %arg4[%c0_6, %c0_7] : memref<1x2048xf32, #tpu.memory_space<vmem>>, vector<1x2048xf32>
    tpu.vector_store %arg4[%c0_6, %c0_7], %7 {strides = array<i32>} : memref<1x2048xf32, #tpu.memory_space<vmem>>, vector<1x2048xf32>,
    %cst_8 = arith.constant 5.000000e-01 : f32
    %9 = vector.broadcast %cst_8 : f32 to vector<32x2048xf32>
    %10 = arith.mulf %9, %5 : vector<32x2048xf32>
    %11 = arith.mulf %6, %6 : vector<32x2048xf32>
    %12 = arith.subf %10, %11 : vector<32x2048xf32>
    %13 = vector.shape_cast %12 : vector<32x2048xf32> to vector<1x32x2048xf32>
    %cst_9 = arith.constant dense<0.000000e+00> : vector<1xf32>
    %14 = vector.multi_reduction <add>, %13, %cst_9 [1, 2] : vector<1x32x2048xf32> to vector<1xf32>
    %15 = vector.shape_cast %14 : vector<1xf32> to vector<1x1x1xf32>
    %16 = vector.extract %15[0, 0, 0] : f32 from vector<1x1x1xf32>
    %17 = vector.broadcast %16 : f32 to vector<1x1xf32>
    %18 = vector.shape_cast %17 : vector<1x1xf32> to vector<1x1x1xf32>
    %19 = vector.broadcast %18 : vector<1x1x1xf32> to vector<1x8x128xf32>
    %c0_10 = arith.constant 0 : index
    %c0_11 = arith.constant 0 : index
    %c0_12 = arith.constant 0 : index
    %20 = vector.load %arg5[%c0_10, %c0_11, %c0_12] : memref<1x8x128xf32, #tpu.memory_space<vmem>>, vector<1x8x128xf32>
    tpu.vector_store %arg5[%c0_10, %c0_11, %c0_12], %19 {strides = array<i32>} : memref<1x8x128xf32, #tpu.memory_space<vmem>>, vector<1x8x128xf32>,
    return
  }
  func.func @transform_0(%arg0: i32) -> (i32, i32) {
    %c0_i32 = arith.constant 0 : i32
    %c0_i32_0 = arith.constant 0 : i32
    return %arg0, %c0_i32 : i32, i32
  }
  func.func @transform_1(%arg0: i32) -> (i32, i32) {
    %c0_i32 = arith.constant 0 : i32
    %c0_i32_0 = arith.constant 0 : i32
    %c0_i32_1 = arith.constant 0 : i32
    return %c0_i32, %c0_i32_0 : i32, i32
  }
  func.func @transform_2(%arg0: i32) -> (i32, i32) {
    %c0_i32 = arith.constant 0 : i32
    %c0_i32_0 = arith.constant 0 : i32
    %c0_i32_1 = arith.constant 0 : i32
    return %c0_i32, %c0_i32_0 : i32, i32
  }
  func.func @transform_3(%arg0: i32) -> (i32, i32) {
    %c0_i32 = arith.constant 0 : i32
    %c0_i32_0 = arith.constant 0 : i32
    return %c0_i32, %arg0 : i32, i32
  }
  func.func @transform_4(%arg0: i32) -> (i32, i32, i32) {
    %c0_i32 = arith.constant 0 : i32
    %c0_i32_0 = arith.constant 0 : i32
    %c0_i32_1 = arith.constant 0 : i32
    return %arg0, %c0_i32, %c0_i32_0 : i32, i32, i32
  }
}

</mosaic_0001>

<llo_original>
// kernel: tpu_custom_call.1
$region0: #{tpu_custom_call.1}
  #allocation0 [shape = 'u32[]', space=smem, size = 0x4, offset = 0x4, fixed_abs, tag = 'smem constant byte address 0x4 - core index']
  #allocation1 [shape = 'u32[72,128]{1,0:T(1,128)}', space=vmem, size = 0x9000, scoped, tag = 'internal scratch']
  %s0 = inlined_call_operand.vmem [shape: f32[4096,32], index: 0, kind: input, shape index: {}]
  %s1 = inlined_call_operand.vmem [shape: f32[33,32], index: 1, kind: input, shape index: {}]
  %s2 = inlined_call_operand.vmem [shape: f32[32,32], index: 2, kind: input, shape index: {}]
  %s3 = inlined_call_operand.hbm [shape: f32[1,4096], index: 3, kind: output, shape index: {0}]
  %s4 = inlined_call_operand.hbm [shape: f32[2,8,128], index: 4, kind: output, shape index: {1}]
  %5 = xla_tuple %s3, %s4
  %s6 = sld [smem:[#allocation0]]
  $region53: #{tpu_custom_call.1} parent=0
    _
  %s8 = ssub.s32 1, %s6
  %s9 = scalar_select 0, %s8, %s6
  $region1: #{tpu_custom_call.1} parent=0
    #allocation2 [shape = 'u8[16384]{0}', space=vmem, size = 0x4000, scoped, tag = 'output window, operand 0']
    #allocation3 [shape = 's32[2]{0}', space=sflag, size = 0x8, scoped, tag = 'scoped memory for tpu_custom_call.1']
    #allocation4 [shape = 'u8[8192]{0}', space=vmem, size = 0x2000, scoped, tag = 'output window, operand 1']
    #allocation5 [shape = 's32[2]{0}', space=sflag, size = 0x8, scoped, tag = 'scoped memory for tpu_custom_call.1']
    %10 = vsyncpa [#allocation3], 0
    %s11 = scalar_lea.sflag [#allocation3], 1
    %12 = vsyncpa %s11, 0
    %13 = vsyncpa [#allocation5], 0
    %s14 = scalar_lea.sflag [#allocation5], 1
    %15 = vsyncpa %s14, 0
    loop: start=0, step=1, limit=4
    $region2: #{tpu_custom_call.1} parent=1 // loop_pre_header
      _
    $region3: #{tpu_custom_call.1} parent=1 // loop_header
      %s17 = sphi 0, %s21
      %p18 = scmp.ge.s32.totalorder %s17, 4
      %s27 = sphi 0, %s29
      %s30 = sphi 0, %s27
      %s31 = sphi 0, %s30
      %s47 = sphi 0, %s31
      %s51 = sphi 0, %s51
      %s53 = sphi 0, %s51
      %s54 = sphi 0, %s53
      %s68 = sphi 0, %s54
      %s72 = sphi 0, %s72
      %s74 = sphi 0, %s72
      %s75 = sphi 0, %s74
      %s89 = sphi 0, %s75
      %s95 = sphi 0, %s97
      %s98 = sphi 0, %s95
      %s99 = sphi 0, %s98
      %s115 = sphi 0, %s99
      %s121 = sphi 0, %s123
      %s124 = sphi 0, %s121
      %s125 = sphi 0, %s124
      %s141 = sphi 0, %s125
    $region4: #{tpu_custom_call.1} parent=1 // loop_header_branch
      %20 = sbr.rel (%p18) target = $region8
    $region5: #{tpu_custom_call.1} parent=1 // loop_body
      %s22 = ssub.s32 %s17, 1
      %s23 = ssub.s32 %s17, 2
      %s24 = sadd.s32 %s17, 1
      %s25 = ssub.s32 %s17, %s24
      %p26 = scmp.eq.s32.totalorder %s25, 0
      %s28 = sadd.s32 %s27, 1
      %s29 = scalar_select %p26, %s27, %s28
      %p32 = pneg %p26
      %p33 = scmp.eq.s32.totalorder %s17, 1
      %p34 = por %p32, %p33
      %p35 = scmp.ne.s32.totalorder %s27, %s30
      %p36 = scmp.eq.s32.totalorder %s17, 0
      %p37 = por %p35, %p36
      %p38 = scmp.ne.s32.totalorder %s27, %s30
      %p39 = scmp.eq.s32.totalorder %s22, 1
      %p40 = por %p38, %p39
      %p41 = scmp.ne.s32.totalorder %s30, %s31
      %p42 = scmp.eq.s32.totalorder %s22, 0
      %p43 = por %p41, %p42
      %p44 = scmp.ne.s32.totalorder %s30, %s31
      %p45 = scmp.eq.s32.totalorder %s23, 1
      %p46 = por %p44, %p45
      %p48 = scmp.ne.s32.totalorder %s31, %s47
      %p49 = scmp.eq.s32.totalorder %s23, 0
      %p50 = por %p48, %p49
      %s52 = sadd.s32 %s51, 1
      %p55 = scmp.eq.s32.totalorder %s17, 1
      %p56 = scmp.ne.s32.totalorder %s51, %s53
      %p57 = scmp.eq.s32.totalorder %s17, 0
      %p58 = por %p56, %p57
      %p59 = scmp.ne.s32.totalorder %s51, %s53
      %p60 = scmp.eq.s32.totalorder %s22, 1
      %p61 = por %p59, %p60
      %p62 = scmp.ne.s32.totalorder %s53, %s54
      %p63 = scmp.eq.s32.totalorder %s22, 0
      %p64 = por %p62, %p63
      %p65 = scmp.ne.s32.totalorder %s53, %s54
      %p66 = scmp.eq.s32.totalorder %s23, 1
      %p67 = por %p65, %p66
      %p69 = scmp.ne.s32.totalorder %s54, %s68
      %p70 = scmp.eq.s32.totalorder %s23, 0
      %p71 = por %p69, %p70
      %s73 = sadd.s32 %s72, 1
      %p76 = scmp.eq.s32.totalorder %s17, 1
      %p77 = scmp.ne.s32.totalorder %s72, %s74
      %p78 = scmp.eq.s32.totalorder %s17, 0
      %p79 = por %p77, %p78
      %p80 = scmp.ne.s32.totalorder %s72, %s74
      %p81 = scmp.eq.s32.totalorder %s22, 1
      %p82 = por %p80, %p81
      %p83 = scmp.ne.s32.totalorder %s74, %s75
      %p84 = scmp.eq.s32.totalorder %s22, 0
      %p85 = por %p83, %p84
      %p86 = scmp.ne.s32.totalorder %s74, %s75
      %p87 = scmp.eq.s32.totalorder %s23, 1
      %p88 = por %p86, %p87
      %p90 = scmp.ne.s32.totalorder %s75, %s89
      %p91 = scmp.eq.s32.totalorder %s23, 0
      %p92 = por %p90, %p91
      %s93 = ssub.s32 %s17, %s24
      %p94 = scmp.eq.s32.totalorder %s93, 0
      %s96 = sadd.s32 %s95, 1
      %s97 = scalar_select %p94, %s95, %s96
      %p100 = pneg %p94
      %p101 = scmp.eq.s32.totalorder %s17, 1
      %p102 = por %p100, %p101
      %p103 = scmp.ne.s32.totalorder %s95, %s98
      %p104 = scmp.eq.s32.totalorder %s17, 0
      %p105 = por %p103, %p104
      %p106 = scmp.ne.s32.totalorder %s95, %s98
      %p107 = scmp.eq.s32.totalorder %s22, 1
      %p108 = por %p106, %p107
      %p109 = scmp.ne.s32.totalorder %s98, %s99
      %p110 = scmp.eq.s32.totalorder %s22, 0
      %p111 = por %p109, %p110
      %p112 = scmp.ne.s32.totalorder %s98, %s99
      %p113 = scmp.eq.s32.totalorder %s23, 1
      %p114 = por %p112, %p113
      %p116 = scmp.ne.s32.totalorder %s99, %s115
      %p117 = scmp.eq.s32.totalorder %s23, 0
      %p118 = por %p116, %p117
      %s119 = ssub.s32 %s17, %s24
      %p120 = scmp.eq.s32.totalorder %s119, 0
      %s122 = sadd.s32 %s121, 1
      %s123 = scalar_select %p120, %s121, %s122
      %p126 = pneg %p120
      %p127 = scmp.eq.s32.totalorder %s17, 1
      %p128 = por %p126, %p127
      %p129 = scmp.ne.s32.totalorder %s121, %s124
      %p130 = scmp.eq.s32.totalorder %s17, 0
      %p131 = por %p129, %p130
      %p132 = scmp.ne.s32.totalorder %s121, %s124
      %p133 = scmp.eq.s32.totalorder %s22, 1
      %p134 = por %p132, %p133
      %p135 = scmp.ne.s32.totalorder %s124, %s125
      %p136 = scmp.eq.s32.totalorder %s22, 0
      %p137 = por %p135, %p136
      %p138 = scmp.ne.s32.totalorder %s124, %s125
      %p139 = scmp.eq.s32.totalorder %s23, 1
      %p140 = por %p138, %p139
      %p142 = scmp.ne.s32.totalorder %s125, %s141
      %p143 = scmp.eq.s32.totalorder %s23, 0
      %p144 = por %p142, %p143
      %p145 = scmp.le.s32.totalorder 1, %s17
      %p146 = scmp.lt.s32.totalorder %s17, 3
      %p147 = pnand %p145, %p146
      %p148 = pneg %p147
      // Predicated region
      $region9: #{tpu_custom_call.1} parent=5 // pred_check
        _
      $region10: #{tpu_custom_call.1} parent=5 // pred_check_branch
        %150 = sbr.rel (%p147) target = $region12
      $region11: #{tpu_custom_call.1} parent=5 // pred_region
        %s151 = ssub.s32 %s17, 1
        // Predicated region
        $region13: #{tpu_custom_call.1} parent=11 // pred_check
          %p152 = pneg %p64
        $region14: #{tpu_custom_call.1} parent=11 // pred_check_branch
          %154 = sbr.rel (%p152) target = $region16
        $region15: #{tpu_custom_call.1} parent=11 // pred_region
          _
        $region16: #{tpu_custom_call.1} parent=11 // pred_fallthru
          _
        // Predicated region
        $region17: #{tpu_custom_call.1} parent=11 // pred_check
          %p155 = pneg %p85
        $region18: #{tpu_custom_call.1} parent=11 // pred_check_branch
          %157 = sbr.rel (%p155) target = $region20
        $region19: #{tpu_custom_call.1} parent=11 // pred_region
          _
        $region20: #{tpu_custom_call.1} parent=11 // pred_fallthru
          _
      $region12: #{tpu_custom_call.1} parent=5 // pred_fallthru
        _
      %p158 = scmp.lt.s32.totalorder %s17, 2
      // Predicated region
      $region21: #{tpu_custom_call.1} parent=5 // pred_check
        %p159 = pneg %p158
      $region22: #{tpu_custom_call.1} parent=5 // pred_check_branch
        %161 = sbr.rel (%p159) target = $region24
      $region23: #{tpu_custom_call.1} parent=5 // pred_region
        // Predicated region
        $region25: #{tpu_custom_call.1} parent=23 // pred_check
          %p162 = pneg %p37
        $region26: #{tpu_custom_call.1} parent=23 // pred_check_branch
          %164 = sbr.rel (%p162) target = $region28
        $region27: #{tpu_custom_call.1} parent=23 // pred_region
          %s165 = smul.u32 256, %s17
          %p166 = scmp.lt.s32.totalorder %s165, 511
          %s167 = scalar_select %p166, %s165, 511
          %s168 = smul.addr %s167, 8
          %s169 = scalar_lea.vmem %s0, %s168
          %s170 = smul.u32 256, %s17
        $region28: #{tpu_custom_call.1} parent=23 // pred_fallthru
          _
      $region24: #{tpu_custom_call.1} parent=5 // pred_fallthru
        _
      %p171 = scmp.le.s32.totalorder 1, %s17
      %p172 = scmp.lt.s32.totalorder %s17, 3
      %p173 = pnand %p171, %p172
      %p174 = pneg %p173
      // Predicated region
      $region29: #{tpu_custom_call.1} parent=5 // pred_check
        _
      $region30: #{tpu_custom_call.1} parent=5 // pred_check_branch
        %176 = sbr.rel (%p173) target = $region32
      $region31: #{tpu_custom_call.1} parent=5 // pred_region
        %s177 = ssub.s32 %s17, 1
        %s178 = smul.u32 256, %s22
        %p179 = scmp.lt.s32.totalorder %s178, 511
        %s180 = scalar_select %p179, %s178, 511
        %s181 = smul.addr %s180, 8
        %s182 = scalar_lea.vmem %s0, %s181
        %p183 = pneg %p43
        %p184 = pneg %p40
        %p185 = pneg %p64
        %p186 = pneg %p61
        %p187 = pneg %p85
        %p188 = pneg %p82
        %p189 = pneg %p111
        %p190 = pneg %p108
        %s191 = sand.u32 %s98, 1
        %s192 = scalar_lea.sflag [#allocation3], %s191
        %s193 = sand.u32 %s98, 1
        %s194 = smul.addr %s193, 16
        %s195 = scalar_lea.vmem [#allocation2], %s194
        %p196 = pneg %p137
        %p197 = pneg %p134
        %s198 = sand.u32 %s124, 1
        %s199 = scalar_lea.sflag [#allocation5], %s198
        %s200 = sand.u32 %s124, 1
        %s201 = smul.addr %s200, 8
        %s202 = scalar_lea.vmem [#allocation4], %s201
        %s203 = smul.u32 256, %s22
        %p204 = scmp.lt.s32.totalorder %s203, 511
        %s205 = scalar_select %p204, %s203, 511
        %s206 = smul.addr %s205, 8
        %s207 = scalar_lea.vmem %s0, %s206
        %s208 = smul.u32 256, %s22
        %s209 = smul.u32 16, %s22
        %v210 = vld [vmem:[%s207] sm:$0xff]
        %v211 = vld [vmem:[%s207 + $0x8] sm:$0xff]
        %v212 = vld [vmem:[%s207 + $0x10] sm:$0xff]
        %v213 = vld [vmem:[%s207 + $0x18] sm:$0xff]
        %v214 = vld [vmem:[%s207 + $0x20] sm:$0xff]
        %v215 = vld [vmem:[%s207 + $0x28] sm:$0xff]
        %v216 = vld [vmem:[%s207 + $0x30] sm:$0xff]
        %v217 = vld [vmem:[%s207 + $0x38] sm:$0xff]
        %v218 = vld [vmem:[%s207 + $0x40] sm:$0xff]
        %v219 = vld [vmem:[%s207 + $0x48] sm:$0xff]
        %v220 = vld [vmem:[%s207 + $0x50] sm:$0xff]
        %v221 = vld [vmem:[%s207 + $0x58] sm:$0xff]
        %v222 = vld [vmem:[%s207 + $0x60] sm:$0xff]
        %v223 = vld [vmem:[%s207 + $0x68] sm:$0xff]
        %v224 = vld [vmem:[%s207 + $0x70] sm:$0xff]
        %v225 = vld [vmem:[%s207 + $0x78] sm:$0xff]
        %v226 = vld [vmem:[%s207 + $0x80] sm:$0xff]
        %v227 = vld [vmem:[%s207 + $0x88] sm:$0xff]
        %v228 = vld [vmem:[%s207 + $0x90] sm:$0xff]
        %v229 = vld [vmem:[%s207 + $0x98] sm:$0xff]
        %v230 = vld [vmem:[%s207 + $0xa0] sm:$0xff]
        %v231 = vld [vmem:[%s207 + $0xa8] sm:$0xff]
        %v232 = vld [vmem:[%s207 + $0xb0] sm:$0xff]
        %v233 = vld [vmem:[%s207 + $0xb8] sm:$0xff]
        %v234 = vld [vmem:[%s207 + $0xc0] sm:$0xff]
        %v235 = vld [vmem:[%s207 + $0xc8] sm:$0xff]
        %v236 = vld [vmem:[%s207 + $0xd0] sm:$0xff]
        %v237 = vld [vmem:[%s207 + $0xd8] sm:$0xff]
        %v238 = vld [vmem:[%s207 + $0xe0] sm:$0xff]
        %v239 = vld [vmem:[%s207 + $0xe8] sm:$0xff]
        %v240 = vld [vmem:[%s207 + $0xf0] sm:$0xff]
        %v241 = vld [vmem:[%s207 + $0xf8] sm:$0xff]
        %v242 = vld [vmem:[%s207 + $0x100] sm:$0xff]
        %v243 = vld [vmem:[%s207 + $0x108] sm:$0xff]
        %v244 = vld [vmem:[%s207 + $0x110] sm:$0xff]
        %v245 = vld [vmem:[%s207 + $0x118] sm:$0xff]
        %v246 = vld [vmem:[%s207 + $0x120] sm:$0xff]
        %v247 = vld [vmem:[%s207 + $0x128] sm:$0xff]
        %v248 = vld [vmem:[%s207 + $0x130] sm:$0xff]
        %v249 = vld [vmem:[%s207 + $0x138] sm:$0xff]
        %v250 = vld [vmem:[%s207 + $0x140] sm:$0xff]
        %v251 = vld [vmem:[%s207 + $0x148] sm:$0xff]
        %v252 = vld [vmem:[%s207 + $0x150] sm:$0xff]
        %v253 = vld [vmem:[%s207 + $0x158] sm:$0xff]
        %v254 = vld [vmem:[%s207 + $0x160] sm:$0xff]
        %v255 = vld [vmem:[%s207 + $0x168] sm:$0xff]
        %v256 = vld [vmem:[%s207 + $0x170] sm:$0xff]
        %v257 = vld [vmem:[%s207 + $0x178] sm:$0xff]
        %v258 = vld [vmem:[%s207 + $0x180] sm:$0xff]
        %v259 = vld [vmem:[%s207 + $0x188] sm:$0xff]
        %v260 = vld [vmem:[%s207 + $0x190] sm:$0xff]
        %v261 = vld [vmem:[%s207 + $0x198] sm:$0xff]
        %v262 = vld [vmem:[%s207 + $0x1a0] sm:$0xff]
        %v263 = vld [vmem:[%s207 + $0x1a8] sm:$0xff]
        %v264 = vld [vmem:[%s207 + $0x1b0] sm:$0xff]
        %v265 = vld [vmem:[%s207 + $0x1b8] sm:$0xff]
        %v266 = vld [vmem:[%s207 + $0x1c0] sm:$0xff]
        %v267 = vld [vmem:[%s207 + $0x1c8] sm:$0xff]
        %v268 = vld [vmem:[%s207 + $0x1d0] sm:$0xff]
        %v269 = vld [vmem:[%s207 + $0x1d8] sm:$0xff]
        %v270 = vld [vmem:[%s207 + $0x1e0] sm:$0xff]
        %v271 = vld [vmem:[%s207 + $0x1e8] sm:$0xff]
        %v272 = vld [vmem:[%s207 + $0x1f0] sm:$0xff]
        %v273 = vld [vmem:[%s207 + $0x1f8] sm:$0xff]
        %v274 = vld [vmem:[%s207 + $0x200] sm:$0xff]
        %v275 = vld [vmem:[%s207 + $0x208] sm:$0xff]
        %v276 = vld [vmem:[%s207 + $0x210] sm:$0xff]
        %v277 = vld [vmem:[%s207 + $0x218] sm:$0xff]
        %v278 = vld [vmem:[%s207 + $0x220] sm:$0xff]
        %v279 = vld [vmem:[%s207 + $0x228] sm:$0xff]
        %v280 = vld [vmem:[%s207 + $0x230] sm:$0xff]
        %v281 = vld [vmem:[%s207 + $0x238] sm:$0xff]
        %v282 = vld [vmem:[%s207 + $0x240] sm:$0xff]
        %v283 = vld [vmem:[%s207 + $0x248] sm:$0xff]
        %v284 = vld [vmem:[%s207 + $0x250] sm:$0xff]
        %v285 = vld [vmem:[%s207 + $0x258] sm:$0xff]
        %v286 = vld [vmem:[%s207 + $0x260] sm:$0xff]
        %v287 = vld [vmem:[%s207 + $0x268] sm:$0xff]
        %v288 = vld [vmem:[%s207 + $0x270] sm:$0xff]
        %v289 = vld [vmem:[%s207 + $0x278] sm:$0xff]
        %v290 = vld [vmem:[%s207 + $0x280] sm:$0xff]
        %v291 = vld [vmem:[%s207 + $0x288] sm:$0xff]
        %v292 = vld [vmem:[%s207 + $0x290] sm:$0xff]
        %v293 = vld [vmem:[%s207 + $0x298] sm:$0xff]
        %v294 = vld [vmem:[%s207 + $0x2a0] sm:$0xff]
        %v295 = vld [vmem:[%s207 + $0x2a8] sm:$0xff]
        %v296 = vld [vmem:[%s207 + $0x2b0] sm:$0xff]
        %v297 = vld [vmem:[%s207 + $0x2b8] sm:$0xff]
        %v298 = vld [vmem:[%s207 + $0x2c0] sm:$0xff]
        %v299 = vld [vmem:[%s207 + $0x2c8] sm:$0xff]
        %v300 = vld [vmem:[%s207 + $0x2d0] sm:$0xff]
        %v301 = vld [vmem:[%s207 + $0x2d8] sm:$0xff]
        %v302 = vld [vmem:[%s207 + $0x2e0] sm:$0xff]
        %v303 = vld [vmem:[%s207 + $0x2e8] sm:$0xff]
        %v304 = vld [vmem:[%s207 + $0x2f0] sm:$0xff]
        %v305 = vld [vmem:[%s207 + $0x2f8] sm:$0xff]
        %v306 = vld [vmem:[%s207 + $0x300] sm:$0xff]
        %v307 = vld [vmem:[%s207 + $0x308] sm:$0xff]
        %v308 = vld [vmem:[%s207 + $0x310] sm:$0xff]
        %v309 = vld [vmem:[%s207 + $0x318] sm:$0xff]
        %v310 = vld [vmem:[%s207 + $0x320] sm:$0xff]
        %v311 = vld [vmem:[%s207 + $0x328] sm:$0xff]
        %v312 = vld [vmem:[%s207 + $0x330] sm:$0xff]
        %v313 = vld [vmem:[%s207 + $0x338] sm:$0xff]
        %v314 = vld [vmem:[%s207 + $0x340] sm:$0xff]
        %v315 = vld [vmem:[%s207 + $0x348] sm:$0xff]
        %v316 = vld [vmem:[%s207 + $0x350] sm:$0xff]
        %v317 = vld [vmem:[%s207 + $0x358] sm:$0xff]
        %v318 = vld [vmem:[%s207 + $0x360] sm:$0xff]
        %v319 = vld [vmem:[%s207 + $0x368] sm:$0xff]
        %v320 = vld [vmem:[%s207 + $0x370] sm:$0xff]
        %v321 = vld [vmem:[%s207 + $0x378] sm:$0xff]
        %v322 = vld [vmem:[%s207 + $0x380] sm:$0xff]
        %v323 = vld [vmem:[%s207 + $0x388] sm:$0xff]
        %v324 = vld [vmem:[%s207 + $0x390] sm:$0xff]
        %v325 = vld [vmem:[%s207 + $0x398] sm:$0xff]
        %v326 = vld [vmem:[%s207 + $0x3a0] sm:$0xff]
        %v327 = vld [vmem:[%s207 + $0x3a8] sm:$0xff]
        %v328 = vld [vmem:[%s207 + $0x3b0] sm:$0xff]
        %v329 = vld [vmem:[%s207 + $0x3b8] sm:$0xff]
        %v330 = vld [vmem:[%s207 + $0x3c0] sm:$0xff]
        %v331 = vld [vmem:[%s207 + $0x3c8] sm:$0xff]
        %v332 = vld [vmem:[%s207 + $0x3d0] sm:$0xff]
        %v333 = vld [vmem:[%s207 + $0x3d8] sm:$0xff]
        %v334 = vld [vmem:[%s207 + $0x3e0] sm:$0xff]
        %v335 = vld [vmem:[%s207 + $0x3e8] sm:$0xff]
        %v336 = vld [vmem:[%s207 + $0x3f0] sm:$0xff]
        %v337 = vld [vmem:[%s207 + $0x3f8] sm:$0xff]
        %v338 = vld [vmem:[%s207 + $0x400] sm:$0xff]
        %v339 = vld [vmem:[%s207 + $0x408] sm:$0xff]
        %v340 = vld [vmem:[%s207 + $0x410] sm:$0xff]
        %v341 = vld [vmem:[%s207 + $0x418] sm:$0xff]
        %v342 = vld [vmem:[%s207 + $0x420] sm:$0xff]
        %v343 = vld [vmem:[%s207 + $0x428] sm:$0xff]
        %v344 = vld [vmem:[%s207 + $0x430] sm:$0xff]
        %v345 = vld [vmem:[%s207 + $0x438] sm:$0xff]
        %v346 = vld [vmem:[%s207 + $0x440] sm:$0xff]
        %v347 = vld [vmem:[%s207 + $0x448] sm:$0xff]
        %v348 = vld [vmem:[%s207 + $0x450] sm:$0xff]
        %v349 = vld [vmem:[%s207 + $0x458] sm:$0xff]
        %v350 = vld [vmem:[%s207 + $0x460] sm:$0xff]
        %v351 = vld [vmem:[%s207 + $0x468] sm:$0xff]
        %v352 = vld [vmem:[%s207 + $0x470] sm:$0xff]
        %v353 = vld [vmem:[%s207 + $0x478] sm:$0xff]
        %v354 = vld [vmem:[%s207 + $0x480] sm:$0xff]
        %v355 = vld [vmem:[%s207 + $0x488] sm:$0xff]
        %v356 = vld [vmem:[%s207 + $0x490] sm:$0xff]
        %v357 = vld [vmem:[%s207 + $0x498] sm:$0xff]
        %v358 = vld [vmem:[%s207 + $0x4a0] sm:$0xff]
        %v359 = vld [vmem:[%s207 + $0x4a8] sm:$0xff]
        %v360 = vld [vmem:[%s207 + $0x4b0] sm:$0xff]
        %v361 = vld [vmem:[%s207 + $0x4b8] sm:$0xff]
        %v362 = vld [vmem:[%s207 + $0x4c0] sm:$0xff]
        %v363 = vld [vmem:[%s207 + $0x4c8] sm:$0xff]
        %v364 = vld [vmem:[%s207 + $0x4d0] sm:$0xff]
        %v365 = vld [vmem:[%s207 + $0x4d8] sm:$0xff]
        %v366 = vld [vmem:[%s207 + $0x4e0] sm:$0xff]
        %v367 = vld [vmem:[%s207 + $0x4e8] sm:$0xff]
        %v368 = vld [vmem:[%s207 + $0x4f0] sm:$0xff]
        %v369 = vld [vmem:[%s207 + $0x4f8] sm:$0xff]
        %v370 = vld [vmem:[%s207 + $0x500] sm:$0xff]
        %v371 = vld [vmem:[%s207 + $0x508] sm:$0xff]
        %v372 = vld [vmem:[%s207 + $0x510] sm:$0xff]
        %v373 = vld [vmem:[%s207 + $0x518] sm:$0xff]
        %v374 = vld [vmem:[%s207 + $0x520] sm:$0xff]
        %v375 = vld [vmem:[%s207 + $0x528] sm:$0xff]
        %v376 = vld [vmem:[%s207 + $0x530] sm:$0xff]
        %v377 = vld [vmem:[%s207 + $0x538] sm:$0xff]
        %v378 = vld [vmem:[%s207 + $0x540] sm:$0xff]
        %v379 = vld [vmem:[%s207 + $0x548] sm:$0xff]
        %v380 = vld [vmem:[%s207 + $0x550] sm:$0xff]
        %v381 = vld [vmem:[%s207 + $0x558] sm:$0xff]
        %v382 = vld [vmem:[%s207 + $0x560] sm:$0xff]
        %v383 = vld [vmem:[%s207 + $0x568] sm:$0xff]
        %v384 = vld [vmem:[%s207 + $0x570] sm:$0xff]
        %v385 = vld [vmem:[%s207 + $0x578] sm:$0xff]
        %v386 = vld [vmem:[%s207 + $0x580] sm:$0xff]
        %v387 = vld [vmem:[%s207 + $0x588] sm:$0xff]
        %v388 = vld [vmem:[%s207 + $0x590] sm:$0xff]
        %v389 = vld [vmem:[%s207 + $0x598] sm:$0xff]
        %v390 = vld [vmem:[%s207 + $0x5a0] sm:$0xff]
        %v391 = vld [vmem:[%s207 + $0x5a8] sm:$0xff]
        %v392 = vld [vmem:[%s207 + $0x5b0] sm:$0xff]
        %v393 = vld [vmem:[%s207 + $0x5b8] sm:$0xff]
        %v394 = vld [vmem:[%s207 + $0x5c0] sm:$0xff]
        %v395 = vld [vmem:[%s207 + $0x5c8] sm:$0xff]
        %v396 = vld [vmem:[%s207 + $0x5d0] sm:$0xff]
        %v397 = vld [vmem:[%s207 + $0x5d8] sm:$0xff]
        %v398 = vld [vmem:[%s207 + $0x5e0] sm:$0xff]
        %v399 = vld [vmem:[%s207 + $0x5e8] sm:$0xff]
        %v400 = vld [vmem:[%s207 + $0x5f0] sm:$0xff]
        %v401 = vld [vmem:[%s207 + $0x5f8] sm:$0xff]
        %v402 = vld [vmem:[%s207 + $0x600] sm:$0xff]
        %v403 = vld [vmem:[%s207 + $0x608] sm:$0xff]
        %v404 = vld [vmem:[%s207 + $0x610] sm:$0xff]
        %v405 = vld [vmem:[%s207 + $0x618] sm:$0xff]
        %v406 = vld [vmem:[%s207 + $0x620] sm:$0xff]
        %v407 = vld [vmem:[%s207 + $0x628] sm:$0xff]
        %v408 = vld [vmem:[%s207 + $0x630] sm:$0xff]
        %v409 = vld [vmem:[%s207 + $0x638] sm:$0xff]
        %v410 = vld [vmem:[%s207 + $0x640] sm:$0xff]
        %v411 = vld [vmem:[%s207 + $0x648] sm:$0xff]
        %v412 = vld [vmem:[%s207 + $0x650] sm:$0xff]
        %v413 = vld [vmem:[%s207 + $0x658] sm:$0xff]
        %v414 = vld [vmem:[%s207 + $0x660] sm:$0xff]
        %v415 = vld [vmem:[%s207 + $0x668] sm:$0xff]
        %v416 = vld [vmem:[%s207 + $0x670] sm:$0xff]
        %v417 = vld [vmem:[%s207 + $0x678] sm:$0xff]
        %v418 = vld [vmem:[%s207 + $0x680] sm:$0xff]
        %v419 = vld [vmem:[%s207 + $0x688] sm:$0xff]
        %v420 = vld [vmem:[%s207 + $0x690] sm:$0xff]
        %v421 = vld [vmem:[%s207 + $0x698] sm:$0xff]
        %v422 = vld [vmem:[%s207 + $0x6a0] sm:$0xff]
        %v423 = vld [vmem:[%s207 + $0x6a8] sm:$0xff]
        %v424 = vld [vmem:[%s207 + $0x6b0] sm:$0xff]
        %v425 = vld [vmem:[%s207 + $0x6b8] sm:$0xff]
        %v426 = vld [vmem:[%s207 + $0x6c0] sm:$0xff]
        %v427 = vld [vmem:[%s207 + $0x6c8] sm:$0xff]
        %v428 = vld [vmem:[%s207 + $0x6d0] sm:$0xff]
        %v429 = vld [vmem:[%s207 + $0x6d8] sm:$0xff]
        %v430 = vld [vmem:[%s207 + $0x6e0] sm:$0xff]
        %v431 = vld [vmem:[%s207 + $0x6e8] sm:$0xff]
        %v432 = vld [vmem:[%s207 + $0x6f0] sm:$0xff]
        %v433 = vld [vmem:[%s207 + $0x6f8] sm:$0xff]
        %v434 = vld [vmem:[%s207 + $0x700] sm:$0xff]
        %v435 = vld [vmem:[%s207 + $0x708] sm:$0xff]
        %v436 = vld [vmem:[%s207 + $0x710] sm:$0xff]
        %v437 = vld [vmem:[%s207 + $0x718] sm:$0xff]
        %v438 = vld [vmem:[%s207 + $0x720] sm:$0xff]
        %v439 = vld [vmem:[%s207 + $0x728] sm:$0xff]
        %v440 = vld [vmem:[%s207 + $0x730] sm:$0xff]
        %v441 = vld [vmem:[%s207 + $0x738] sm:$0xff]
        %v442 = vld [vmem:[%s207 + $0x740] sm:$0xff]
        %v443 = vld [vmem:[%s207 + $0x748] sm:$0xff]
        %v444 = vld [vmem:[%s207 + $0x750] sm:$0xff]
        %v445 = vld [vmem:[%s207 + $0x758] sm:$0xff]
        %v446 = vld [vmem:[%s207 + $0x760] sm:$0xff]
        %v447 = vld [vmem:[%s207 + $0x768] sm:$0xff]
        %v448 = vld [vmem:[%s207 + $0x770] sm:$0xff]
        %v449 = vld [vmem:[%s207 + $0x778] sm:$0xff]
        %v450 = vld [vmem:[%s207 + $0x780] sm:$0xff]
        %v451 = vld [vmem:[%s207 + $0x788] sm:$0xff]
        %v452 = vld [vmem:[%s207 + $0x790] sm:$0xff]
        %v453 = vld [vmem:[%s207 + $0x798] sm:$0xff]
        %v454 = vld [vmem:[%s207 + $0x7a0] sm:$0xff]
        %v455 = vld [vmem:[%s207 + $0x7a8] sm:$0xff]
        %v456 = vld [vmem:[%s207 + $0x7b0] sm:$0xff]
        %v457 = vld [vmem:[%s207 + $0x7b8] sm:$0xff]
        %v458 = vld [vmem:[%s207 + $0x7c0] sm:$0xff]
        %v459 = vld [vmem:[%s207 + $0x7c8] sm:$0xff]
        %v460 = vld [vmem:[%s207 + $0x7d0] sm:$0xff]
        %v461 = vld [vmem:[%s207 + $0x7d8] sm:$0xff]
        %v462 = vld [vmem:[%s207 + $0x7e0] sm:$0xff]
        %v463 = vld [vmem:[%s207 + $0x7e8] sm:$0xff]
        %v464 = vld [vmem:[%s207 + $0x7f0] sm:$0xff]
        %v465 = vld [vmem:[%s207 + $0x7f8] sm:$0xff]
        %v466 = vmul.f32 %v210, %v210
        %v467 = vmul.f32 %v211, %v211
        %v468 = vmul.f32 %v212, %v212
        %v469 = vmul.f32 %v213, %v213
        %v470 = vmul.f32 %v214, %v214
        %v471 = vmul.f32 %v215, %v215
        %v472 = vmul.f32 %v216, %v216
        %v473 = vmul.f32 %v217, %v217
        %v474 = vmul.f32 %v218, %v218
        %v475 = vmul.f32 %v219, %v219
        %v476 = vmul.f32 %v220, %v220
        %v477 = vmul.f32 %v221, %v221
        %v478 = vmul.f32 %v222, %v222
        %v479 = vmul.f32 %v223, %v223
        %v480 = vmul.f32 %v224, %v224
        %v481 = vmul.f32 %v225, %v225
        %v482 = vmul.f32 %v226, %v226
        %v483 = vmul.f32 %v227, %v227
        %v484 = vmul.f32 %v228, %v228
        %v485 = vmul.f32 %v229, %v229
        %v486 = vmul.f32 %v230, %v230
        %v487 = vmul.f32 %v231, %v231
        %v488 = vmul.f32 %v232, %v232
        %v489 = vmul.f32 %v233, %v233
        %v490 = vmul.f32 %v234, %v234
        %v491 = vmul.f32 %v235, %v235
        %v492 = vmul.f32 %v236, %v236
        %v493 = vmul.f32 %v237, %v237
        %v494 = vmul.f32 %v238, %v238
        %v495 = vmul.f32 %v239, %v239
        %v496 = vmul.f32 %v240, %v240
        %v497 = vmul.f32 %v241, %v241
        %v498 = vmul.f32 %v242, %v242
        %v499 = vmul.f32 %v243, %v243
        %v500 = vmul.f32 %v244, %v244
        %v501 = vmul.f32 %v245, %v245
        %v502 = vmul.f32 %v246, %v246
        %v503 = vmul.f32 %v247, %v247
        %v504 = vmul.f32 %v248, %v248
        %v505 = vmul.f32 %v249, %v249
        %v506 = vmul.f32 %v250, %v250
        %v507 = vmul.f32 %v251, %v251
        %v508 = vmul.f32 %v252, %v252
        %v509 = vmul.f32 %v253, %v253
        %v510 = vmul.f32 %v254, %v254
        %v511 = vmul.f32 %v255, %v255
        %v512 = vmul.f32 %v256, %v256
        %v513 = vmul.f32 %v257, %v257
        %v514 = vmul.f32 %v258, %v258
        %v515 = vmul.f32 %v259, %v259
        %v516 = vmul.f32 %v260, %v260
        %v517 = vmul.f32 %v261, %v261
        %v518 = vmul.f32 %v262, %v262
        %v519 = vmul.f32 %v263, %v263
        %v520 = vmul.f32 %v264, %v264
        %v521 = vmul.f32 %v265, %v265
        %v522 = vmul.f32 %v266, %v266
        %v523 = vmul.f32 %v267, %v267
        %v524 = vmul.f32 %v268, %v268
        %v525 = vmul.f32 %v269, %v269
        %v526 = vmul.f32 %v270, %v270
        %v527 = vmul.f32 %v271, %v271
        %v528 = vmul.f32 %v272, %v272
        %v529 = vmul.f32 %v273, %v273
        %v530 = vmul.f32 %v274, %v274
        %v531 = vmul.f32 %v275, %v275
        %v532 = vmul.f32 %v276, %v276
        %v533 = vmul.f32 %v277, %v277
        %v534 = vmul.f32 %v278, %v278
        %v535 = vmul.f32 %v279, %v279
        %v536 = vmul.f32 %v280, %v280
        %v537 = vmul.f32 %v281, %v281
        %v538 = vmul.f32 %v282, %v282
        %v539 = vmul.f32 %v283, %v283
        %v540 = vmul.f32 %v284, %v284
        %v541 = vmul.f32 %v285, %v285
        %v542 = vmul.f32 %v286, %v286
        %v543 = vmul.f32 %v287, %v287
        %v544 = vmul.f32 %v288, %v288
        %v545 = vmul.f32 %v289, %v289
        %v546 = vmul.f32 %v290, %v290
        %v547 = vmul.f32 %v291, %v291
        %v548 = vmul.f32 %v292, %v292
        %v549 = vmul.f32 %v293, %v293
        %v550 = vmul.f32 %v294, %v294
        %v551 = vmul.f32 %v295, %v295
        %v552 = vmul.f32 %v296, %v296
        %v553 = vmul.f32 %v297, %v297
        %v554 = vmul.f32 %v298, %v298
        %v555 = vmul.f32 %v299, %v299
        %v556 = vmul.f32 %v300, %v300
        %v557 = vmul.f32 %v301, %v301
        %v558 = vmul.f32 %v302, %v302
        %v559 = vmul.f32 %v303, %v303
        %v560 = vmul.f32 %v304, %v304
        %v561 = vmul.f32 %v305, %v305
        %v562 = vmul.f32 %v306, %v306
        %v563 = vmul.f32 %v307, %v307
        %v564 = vmul.f32 %v308, %v308
        %v565 = vmul.f32 %v309, %v309
        %v566 = vmul.f32 %v310, %v310
        %v567 = vmul.f32 %v311, %v311
        %v568 = vmul.f32 %v312, %v312
        %v569 = vmul.f32 %v313, %v313
        %v570 = vmul.f32 %v314, %v314
        %v571 = vmul.f32 %v315, %v315
        %v572 = vmul.f32 %v316, %v316
        %v573 = vmul.f32 %v317, %v317
        %v574 = vmul.f32 %v318, %v318
        %v575 = vmul.f32 %v319, %v319
        %v576 = vmul.f32 %v320, %v320
        %v577 = vmul.f32 %v321, %v321
        %v578 = vmul.f32 %v322, %v322
        %v579 = vmul.f32 %v323, %v323
        %v580 = vmul.f32 %v324, %v324
        %v581 = vmul.f32 %v325, %v325
        %v582 = vmul.f32 %v326, %v326
        %v583 = vmul.f32 %v327, %v327
        %v584 = vmul.f32 %v328, %v328
        %v585 = vmul.f32 %v329, %v329
        %v586 = vmul.f32 %v330, %v330
        %v587 = vmul.f32 %v331, %v331
        %v588 = vmul.f32 %v332, %v332
        %v589 = vmul.f32 %v333, %v333
        %v590 = vmul.f32 %v334, %v334
        %v591 = vmul.f32 %v335, %v335
        %v592 = vmul.f32 %v336, %v336
        %v593 = vmul.f32 %v337, %v337
        %v594 = vmul.f32 %v338, %v338
        %v595 = vmul.f32 %v339, %v339
        %v596 = vmul.f32 %v340, %v340
        %v597 = vmul.f32 %v341, %v341
        %v598 = vmul.f32 %v342, %v342
        %v599 = vmul.f32 %v343, %v343
        %v600 = vmul.f32 %v344, %v344
        %v601 = vmul.f32 %v345, %v345
        %v602 = vmul.f32 %v346, %v346
        %v603 = vmul.f32 %v347, %v347
        %v604 = vmul.f32 %v348, %v348
        %v605 = vmul.f32 %v349, %v349
        %v606 = vmul.f32 %v350, %v350
        %v607 = vmul.f32 %v351, %v351
        %v608 = vmul.f32 %v352, %v352
        %v609 = vmul.f32 %v353, %v353
        %v610 = vmul.f32 %v354, %v354
        %v611 = vmul.f32 %v355, %v355
        %v612 = vmul.f32 %v356, %v356
        %v613 = vmul.f32 %v357, %v357
        %v614 = vmul.f32 %v358, %v358
        %v615 = vmul.f32 %v359, %v359
        %v616 = vmul.f32 %v360, %v360
        %v617 = vmul.f32 %v361, %v361
        %v618 = vmul.f32 %v362, %v362
        %v619 = vmul.f32 %v363, %v363
        %v620 = vmul.f32 %v364, %v364
        %v621 = vmul.f32 %v365, %v365
        %v622 = vmul.f32 %v366, %v366
        %v623 = vmul.f32 %v367, %v367
        %v624 = vmul.f32 %v368, %v368
        %v625 = vmul.f32 %v369, %v369
        %v626 = vmul.f32 %v370, %v370
        %v627 = vmul.f32 %v371, %v371
        %v628 = vmul.f32 %v372, %v372
        %v629 = vmul.f32 %v373, %v373
        %v630 = vmul.f32 %v374, %v374
        %v631 = vmul.f32 %v375, %v375
        %v632 = vmul.f32 %v376, %v376
        %v633 = vmul.f32 %v377, %v377
        %v634 = vmul.f32 %v378, %v378
        %v635 = vmul.f32 %v379, %v379
        %v636 = vmul.f32 %v380, %v380
        %v637 = vmul.f32 %v381, %v381
        %v638 = vmul.f32 %v382, %v382
        %v639 = vmul.f32 %v383, %v383
        %v640 = vmul.f32 %v384, %v384
        %v641 = vmul.f32 %v385, %v385
        %v642 = vmul.f32 %v386, %v386
        %v643 = vmul.f32 %v387, %v387
        %v644 = vmul.f32 %v388, %v388
        %v645 = vmul.f32 %v389, %v389
        %v646 = vmul.f32 %v390, %v390
        %v647 = vmul.f32 %v391, %v391
        %v648 = vmul.f32 %v392, %v392
        %v649 = vmul.f32 %v393, %v393
        %v650 = vmul.f32 %v394, %v394
        %v651 = vmul.f32 %v395, %v395
        %v652 = vmul.f32 %v396, %v396
        %v653 = vmul.f32 %v397, %v397
        %v654 = vmul.f32 %v398, %v398
        %v655 = vmul.f32 %v399, %v399
        %v656 = vmul.f32 %v400, %v400
        %v657 = vmul.f32 %v401, %v401
        %v658 = vmul.f32 %v402, %v402
        %v659 = vmul.f32 %v403, %v403
        %v660 = vmul.f32 %v404, %v404
        %v661 = vmul.f32 %v405, %v405
        %v662 = vmul.f32 %v406, %v406
        %v663 = vmul.f32 %v407, %v407
        %v664 = vmul.f32 %v408, %v408
        %v665 = vmul.f32 %v409, %v409
        %v666 = vmul.f32 %v410, %v410
        %v667 = vmul.f32 %v411, %v411
        %v668 = vmul.f32 %v412, %v412
        %v669 = vmul.f32 %v413, %v413
        %v670 = vmul.f32 %v414, %v414
        %v671 = vmul.f32 %v415, %v415
        %v672 = vmul.f32 %v416, %v416
        %v673 = vmul.f32 %v417, %v417
        %v674 = vmul.f32 %v418, %v418
        %v675 = vmul.f32 %v419, %v419
        %v676 = vmul.f32 %v420, %v420
        %v677 = vmul.f32 %v421, %v421
        %v678 = vmul.f32 %v422, %v422
        %v679 = vmul.f32 %v423, %v423
        %v680 = vmul.f32 %v424, %v424
        %v681 = vmul.f32 %v425, %v425
        %v682 = vmul.f32 %v426, %v426
        %v683 = vmul.f32 %v427, %v427
        %v684 = vmul.f32 %v428, %v428
        %v685 = vmul.f32 %v429, %v429
        %v686 = vmul.f32 %v430, %v430
        %v687 = vmul.f32 %v431, %v431
        %v688 = vmul.f32 %v432, %v432
        %v689 = vmul.f32 %v433, %v433
        %v690 = vmul.f32 %v434, %v434
        %v691 = vmul.f32 %v435, %v435
        %v692 = vmul.f32 %v436, %v436
        %v693 = vmul.f32 %v437, %v437
        %v694 = vmul.f32 %v438, %v438
        %v695 = vmul.f32 %v439, %v439
        %v696 = vmul.f32 %v440, %v440
        %v697 = vmul.f32 %v441, %v441
        %v698 = vmul.f32 %v442, %v442
        %v699 = vmul.f32 %v443, %v443
        %v700 = vmul.f32 %v444, %v444
        %v701 = vmul.f32 %v445, %v445
        %v702 = vmul.f32 %v446, %v446
        %v703 = vmul.f32 %v447, %v447
        %v704 = vmul.f32 %v448, %v448
        %v705 = vmul.f32 %v449, %v449
        %v706 = vmul.f32 %v450, %v450
        %v707 = vmul.f32 %v451, %v451
        %v708 = vmul.f32 %v452, %v452
        %v709 = vmul.f32 %v453, %v453
        %v710 = vmul.f32 %v454, %v454
        %v711 = vmul.f32 %v455, %v455
        %v712 = vmul.f32 %v456, %v456
        %v713 = vmul.f32 %v457, %v457
        %v714 = vmul.f32 %v458, %v458
        %v715 = vmul.f32 %v459, %v459
        %v716 = vmul.f32 %v460, %v460
        %v717 = vmul.f32 %v461, %v461
        %v718 = vmul.f32 %v462, %v462
        %v719 = vmul.f32 %v463, %v463
        %v720 = vmul.f32 %v464, %v464
        %v721 = vmul.f32 %v465, %v465
        %v722 = vld [vmem:[%s1] sm:$0xff]
        %v723 = vld [vmem:[%s1 + $0x8] sm:$0xff]
        %v724 = vld [vmem:[%s1 + $0x10] sm:$0xff]
        %v725 = vld [vmem:[%s1 + $0x18] sm:$0xff]
        %v726 = vld [vmem:[%s1 + $0x20] sm:$0x1]
        %vm727 = vcmask 261120
        %v729 = vsel %vm727, %v722, 0
        %v732 = vsel %vm727, %v723, 0
        %v735 = vsel %vm727, %v724, 0
        %v738 = vsel %vm727, %v725, 0
        %v741 = vsel %vm727, %v726, 0
        %v744 = vsel %vm727, %v210, 0
        %v747 = vsel %vm727, %v211, 0
        %v750 = vsel %vm727, %v212, 0
        %v753 = vsel %vm727, %v213, 0
        %v756 = vsel %vm727, %v214, 0
        %v759 = vsel %vm727, %v215, 0
        %v762 = vsel %vm727, %v216, 0
        %v765 = vsel %vm727, %v217, 0
        %v768 = vsel %vm727, %v218, 0
        %v771 = vsel %vm727, %v219, 0
        %v774 = vsel %vm727, %v220, 0
        %v777 = vsel %vm727, %v221, 0
        %v780 = vsel %vm727, %v222, 0
        %v783 = vsel %vm727, %v223, 0
        %v786 = vsel %vm727, %v224, 0
        %v789 = vsel %vm727, %v225, 0
        %v792 = vsel %vm727, %v226, 0
        %v795 = vsel %vm727, %v227, 0
        %v798 = vsel %vm727, %v228, 0
        %v801 = vsel %vm727, %v229, 0
        %v804 = vsel %vm727, %v230, 0
        %v807 = vsel %vm727, %v231, 0
        %v810 = vsel %vm727, %v232, 0
        %v813 = vsel %vm727, %v233, 0
        %v816 = vsel %vm727, %v234, 0
        %v819 = vsel %vm727, %v235, 0
        %v822 = vsel %vm727, %v236, 0
        %v825 = vsel %vm727, %v237, 0
        %v828 = vsel %vm727, %v238, 0
        %v831 = vsel %vm727, %v239, 0
        %v834 = vsel %vm727, %v240, 0
        %v837 = vsel %vm727, %v241, 0
        %v840 = vsel %vm727, %v242, 0
        %v843 = vsel %vm727, %v243, 0
        %v846 = vsel %vm727, %v244, 0
        %v849 = vsel %vm727, %v245, 0
        %v852 = vsel %vm727, %v246, 0
        %v855 = vsel %vm727, %v247, 0
        %v858 = vsel %vm727, %v248, 0
        %v861 = vsel %vm727, %v249, 0
        %v864 = vsel %vm727, %v250, 0
        %v867 = vsel %vm727, %v251, 0
        %v870 = vsel %vm727, %v252, 0
        %v873 = vsel %vm727, %v253, 0
        %v876 = vsel %vm727, %v254, 0
        %v879 = vsel %vm727, %v255, 0
        %v882 = vsel %vm727, %v256, 0
        %v885 = vsel %vm727, %v257, 0
        %v888 = vsel %vm727, %v258, 0
        %v891 = vsel %vm727, %v259, 0
        %v894 = vsel %vm727, %v260, 0
        %v897 = vsel %vm727, %v261, 0
        %v900 = vsel %vm727, %v262, 0
        %v903 = vsel %vm727, %v263, 0
        %v906 = vsel %vm727, %v264, 0
        %v909 = vsel %vm727, %v265, 0
        %v912 = vsel %vm727, %v266, 0
        %v915 = vsel %vm727, %v267, 0
        %v918 = vsel %vm727, %v268, 0
        %v921 = vsel %vm727, %v269, 0
        %v924 = vsel %vm727, %v270, 0
        %v927 = vsel %vm727, %v271, 0
        %v930 = vsel %vm727, %v272, 0
        %v933 = vsel %vm727, %v273, 0
        %v936 = vsel %vm727, %v274, 0
        %v939 = vsel %vm727, %v275, 0
        %v942 = vsel %vm727, %v276, 0
        %v945 = vsel %vm727, %v277, 0
        %v948 = vsel %vm727, %v278, 0
        %v951 = vsel %vm727, %v279, 0
        %v954 = vsel %vm727, %v280, 0
        %v957 = vsel %vm727, %v281, 0
        %v960 = vsel %vm727, %v282, 0
        %v963 = vsel %vm727, %v283, 0
        %v966 = vsel %vm727, %v284, 0
        %v969 = vsel %vm727, %v285, 0
        %v972 = vsel %vm727, %v286, 0
        %v975 = vsel %vm727, %v287, 0
        %v978 = vsel %vm727, %v288, 0
        %v981 = vsel %vm727, %v289, 0
        %v984 = vsel %vm727, %v290, 0
        %v987 = vsel %vm727, %v291, 0
        %v990 = vsel %vm727, %v292, 0
        %v993 = vsel %vm727, %v293, 0
        %v996 = vsel %vm727, %v294, 0
        %v999 = vsel %vm727, %v295, 0
        %v1002 = vsel %vm727, %v296, 0
        %v1005 = vsel %vm727, %v297, 0
        %v1008 = vsel %vm727, %v298, 0
        %v1011 = vsel %vm727, %v299, 0
        %v1014 = vsel %vm727, %v300, 0
        %v1017 = vsel %vm727, %v301, 0
        %v1020 = vsel %vm727, %v302, 0
        %v1023 = vsel %vm727, %v303, 0
        %v1026 = vsel %vm727, %v304, 0
        %v1029 = vsel %vm727, %v305, 0
        %v1032 = vsel %vm727, %v306, 0
        %v1035 = vsel %vm727, %v307, 0
        %v1038 = vsel %vm727, %v308, 0
        %v1041 = vsel %vm727, %v309, 0
        %v1044 = vsel %vm727, %v310, 0
        %v1047 = vsel %vm727, %v311, 0
        %v1050 = vsel %vm727, %v312, 0
        %v1053 = vsel %vm727, %v313, 0
        %v1056 = vsel %vm727, %v314, 0
        %v1059 = vsel %vm727, %v315, 0
        %v1062 = vsel %vm727, %v316, 0
        %v1065 = vsel %vm727, %v317, 0
        %v1068 = vsel %vm727, %v318, 0
        %v1071 = vsel %vm727, %v319, 0
        %v1074 = vsel %vm727, %v320, 0
        %v1077 = vsel %vm727, %v321, 0
        %v1080 = vsel %vm727, %v322, 0
        %v1083 = vsel %vm727, %v323, 0
        %v1086 = vsel %vm727, %v324, 0
        %v1089 = vsel %vm727, %v325, 0
        %v1092 = vsel %vm727, %v326, 0
        %v1095 = vsel %vm727, %v327, 0
        %v1098 = vsel %vm727, %v328, 0
        %v1101 = vsel %vm727, %v329, 0
        %v1104 = vsel %vm727, %v330, 0
        %v1107 = vsel %vm727, %v331, 0
        %v1110 = vsel %vm727, %v332, 0
        %v1113 = vsel %vm727, %v333, 0
        %v1116 = vsel %vm727, %v334, 0
        %v1119 = vsel %vm727, %v335, 0
        %v1122 = vsel %vm727, %v336, 0
        %v1125 = vsel %vm727, %v337, 0
        %v1128 = vsel %vm727, %v338, 0
        %v1131 = vsel %vm727, %v339, 0
        %v1134 = vsel %vm727, %v340, 0
        %v1137 = vsel %vm727, %v341, 0
        %v1140 = vsel %vm727, %v342, 0
        %v1143 = vsel %vm727, %v343, 0
        %v1146 = vsel %vm727, %v344, 0
        %v1149 = vsel %vm727, %v345, 0
        %v1152 = vsel %vm727, %v346, 0
        %v1155 = vsel %vm727, %v347, 0
        %v1158 = vsel %vm727, %v348, 0
        %v1161 = vsel %vm727, %v349, 0
        %v1164 = vsel %vm727, %v350, 0
        %v1167 = vsel %vm727, %v351, 0
        %v1170 = vsel %vm727, %v352, 0
        %v1173 = vsel %vm727, %v353, 0
        %v1176 = vsel %vm727, %v354, 0
        %v1179 = vsel %vm727, %v355, 0
        %v1182 = vsel %vm727, %v356, 0
        %v1185 = vsel %vm727, %v357, 0
        %v1188 = vsel %vm727, %v358, 0
        %v1191 = vsel %vm727, %v359, 0
        %v1194 = vsel %vm727, %v360, 0
        %v1197 = vsel %vm727, %v361, 0
        %v1200 = vsel %vm727, %v362, 0
        %v1203 = vsel %vm727, %v363, 0
        %v1206 = vsel %vm727, %v364, 0
        %v1209 = vsel %vm727, %v365, 0
        %v1212 = vsel %vm727, %v366, 0
        %v1215 = vsel %vm727, %v367, 0
        %v1218 = vsel %vm727, %v368, 0
        %v1221 = vsel %vm727, %v369, 0
        %v1224 = vsel %vm727, %v370, 0
        %v1227 = vsel %vm727, %v371, 0
        %v1230 = vsel %vm727, %v372, 0
        %v1233 = vsel %vm727, %v373, 0
        %v1236 = vsel %vm727, %v374, 0
        %v1239 = vsel %vm727, %v375, 0
        %v1242 = vsel %vm727, %v376, 0
        %v1245 = vsel %vm727, %v377, 0
        %v1248 = vsel %vm727, %v378, 0
        %v1251 = vsel %vm727, %v379, 0
        %v1254 = vsel %vm727, %v380, 0
        %v1257 = vsel %vm727, %v381, 0
        %v1260 = vsel %vm727, %v382, 0
        %v1263 = vsel %vm727, %v383, 0
        %v1266 = vsel %vm727, %v384, 0
        %v1269 = vsel %vm727, %v385, 0
        %v1272 = vsel %vm727, %v386, 0
        %v1275 = vsel %vm727, %v387, 0
        %v1278 = vsel %vm727, %v388, 0
        %v1281 = vsel %vm727, %v389, 0
        %v1284 = vsel %vm727, %v390, 0
        %v1287 = vsel %vm727, %v391, 0
        %v1290 = vsel %vm727, %v392, 0
        %v1293 = vsel %vm727, %v393, 0
        %v1296 = vsel %vm727, %v394, 0
        %v1299 = vsel %vm727, %v395, 0
        %v1302 = vsel %vm727, %v396, 0
        %v1305 = vsel %vm727, %v397, 0
        %v1308 = vsel %vm727, %v398, 0
        %v1311 = vsel %vm727, %v399, 0
        %v1314 = vsel %vm727, %v400, 0
        %v1317 = vsel %vm727, %v401, 0
        %v1320 = vsel %vm727, %v402, 0
        %v1323 = vsel %vm727, %v403, 0
        %v1326 = vsel %vm727, %v404, 0
        %v1329 = vsel %vm727, %v405, 0
        %v1332 = vsel %vm727, %v406, 0
        %v1335 = vsel %vm727, %v407, 0
        %v1338 = vsel %vm727, %v408, 0
        %v1341 = vsel %vm727, %v409, 0
        %v1344 = vsel %vm727, %v410, 0
        %v1347 = vsel %vm727, %v411, 0
        %v1350 = vsel %vm727, %v412, 0
        %v1353 = vsel %vm727, %v413, 0
        %v1356 = vsel %vm727, %v414, 0
        %v1359 = vsel %vm727, %v415, 0
        %v1362 = vsel %vm727, %v416, 0
        %v1365 = vsel %vm727, %v417, 0
        %v1368 = vsel %vm727, %v418, 0
        %v1371 = vsel %vm727, %v419, 0
        %v1374 = vsel %vm727, %v420, 0
        %v1377 = vsel %vm727, %v421, 0
        %v1380 = vsel %vm727, %v422, 0
        %v1383 = vsel %vm727, %v423, 0
        %v1386 = vsel %vm727, %v424, 0
        %v1389 = vsel %vm727, %v425, 0
        %v1392 = vsel %vm727, %v426, 0
        %v1395 = vsel %vm727, %v427, 0
        %v1398 = vsel %vm727, %v428, 0
        %v1401 = vsel %vm727, %v429, 0
        %v1404 = vsel %vm727, %v430, 0
        %v1407 = vsel %vm727, %v431, 0
        %v1410 = vsel %vm727, %v432, 0
        %v1413 = vsel %vm727, %v433, 0
        %v1416 = vsel %vm727, %v434, 0
        %v1419 = vsel %vm727, %v435, 0
        %v1422 = vsel %vm727, %v436, 0
        %v1425 = vsel %vm727, %v437, 0
        %v1428 = vsel %vm727, %v438, 0
        %v1431 = vsel %vm727, %v439, 0
        %v1434 = vsel %vm727, %v440, 0
        %v1437 = vsel %vm727, %v441, 0
        %v1440 = vsel %vm727, %v442, 0
        %v1443 = vsel %vm727, %v443, 0
        %v1446 = vsel %vm727, %v444, 0
        %v1449 = vsel %vm727, %v445, 0
        %v1452 = vsel %vm727, %v446, 0
        %v1455 = vsel %vm727, %v447, 0
        %v1458 = vsel %vm727, %v448, 0
        %v1461 = vsel %vm727, %v449, 0
        %v1464 = vsel %vm727, %v450, 0
        %v1467 = vsel %vm727, %v451, 0
        %v1470 = vsel %vm727, %v452, 0
        %v1473 = vsel %vm727, %v453, 0
        %v1476 = vsel %vm727, %v454, 0
        %v1479 = vsel %vm727, %v455, 0
        %v1482 = vsel %vm727, %v456, 0
        %v1485 = vsel %vm727, %v457, 0
        %v1488 = vsel %vm727, %v458, 0
        %v1491 = vsel %vm727, %v459, 0
        %v1494 = vsel %vm727, %v460, 0
        %v1497 = vsel %vm727, %v461, 0
        %v1500 = vsel %vm727, %v462, 0
        %v1503 = vsel %vm727, %v463, 0
        %v1506 = vsel %vm727, %v464, 0
        %v1509 = vsel %vm727, %v465, 0
        %1511 = vmatpush.xpose.msra.mxu0 %v789
        %1512 = vmatpush.xpose.msra.mxu0 %v786
        %1513 = vmatpush.xpose.msra.mxu0 %v783
        %1514 = vmatpush.xpose.msra.mxu0 %v780
        %1515 = vmatpush.xpose.msra.mxu0 %v777
        %1516 = vmatpush.xpose.msra.mxu0 %v774
        %1517 = vmatpush.xpose.msra.mxu0 %v771
        %1518 = vmatpush.xpose.msra.mxu0 %v768
        %1519 = vmatpush.xpose.msra.mxu0 %v765
        %1520 = vmatpush.xpose.msra.mxu0 %v762
        %1521 = vmatpush.xpose.msra.mxu0 %v759
        %1522 = vmatpush.xpose.msra.mxu0 %v756
        %1523 = vmatpush.xpose.msra.mxu0 %v753
        %1524 = vmatpush.xpose.msra.mxu0 %v750
        %1525 = vmatpush.xpose.msra.mxu0 %v747
        %1526 = vmatpush.xpose.msra.mxu0 %v744
        %1527 = vmatmul.f32.gmra.mxu0 %v729
        %v1528 = vpop.f32.mrf.mxu0
        %v1529 = vadd.f32 0.0, %v1528
        %1530 = vmatmul.f32.gmra.mxu0 %v732
        %v1531 = vpop.f32.mrf.mxu0
        %v1532 = vadd.f32 0.0, %v1531
        %1533 = vmatmul.f32.gmra.mxu0 %v735
        %v1534 = vpop.f32.mrf.mxu0
        %v1535 = vadd.f32 0.0, %v1534
        %1536 = vmatmul.f32.gmra.mxu0 %v738
        %v1537 = vpop.f32.mrf.mxu0
        %v1538 = vadd.f32 0.0, %v1537
        %1539 = vmatmul.f32.gmra.mxu0 %v741
        %v1540 = vpop.f32.mrf.mxu0
        %v1541 = vadd.f32 0.0, %v1540
        %1542 = vdwg.mxu0
        %1543 = vmatpush.xpose.msra.mxu0 %v837
        %1544 = vmatpush.xpose.msra.mxu0 %v834
        %1545 = vmatpush.xpose.msra.mxu0 %v831
        %1546 = vmatpush.xpose.msra.mxu0 %v828
        %1547 = vmatpush.xpose.msra.mxu0 %v825
        %1548 = vmatpush.xpose.msra.mxu0 %v822
        %1549 = vmatpush.xpose.msra.mxu0 %v819
        %1550 = vmatpush.xpose.msra.mxu0 %v816
        %1551 = vmatpush.xpose.msra.mxu0 %v813
        %1552 = vmatpush.xpose.msra.mxu0 %v810
        %1553 = vmatpush.xpose.msra.mxu0 %v807
        %1554 = vmatpush.xpose.msra.mxu0 %v804
        %1555 = vmatpush.xpose.msra.mxu0 %v801
        %1556 = vmatpush.xpose.msra.mxu0 %v798
        %1557 = vmatpush.xpose.msra.mxu0 %v795
        %1558 = vmatpush.xpose.msra.mxu0 %v792
        %1559 = vmatmul.f32.gmra.mxu0 %v729
        %v1560 = vpop.f32.mrf.mxu0
        %v1561 = vadd.f32 0.0, %v1560
        %1562 = vmatmul.f32.gmra.mxu0 %v732
        %v1563 = vpop.f32.mrf.mxu0
        %v1564 = vadd.f32 0.0, %v1563
        %1565 = vmatmul.f32.gmra.mxu0 %v735
        %v1566 = vpop.f32.mrf.mxu0
        %v1567 = vadd.f32 0.0, %v1566
        %1568 = vmatmul.f32.gmra.mxu0 %v738
        %v1569 = vpop.f32.mrf.mxu0
        %v1570 = vadd.f32 0.0, %v1569
        %1571 = vmatmul.f32.gmra.mxu0 %v741
        %v1572 = vpop.f32.mrf.mxu0
        %v1573 = vadd.f32 0.0, %v1572
        %1574 = vdwg.mxu0
        %1575 = vmatpush.xpose.msra.mxu0 %v885
        %1576 = vmatpush.xpose.msra.mxu0 %v882
        %1577 = vmatpush.xpose.msra.mxu0 %v879
        %1578 = vmatpush.xpose.msra.mxu0 %v876
        %1579 = vmatpush.xpose.msra.mxu0 %v873
        %1580 = vmatpush.xpose.msra.mxu0 %v870
        %1581 = vmatpush.xpose.msra.mxu0 %v867
        %1582 = vmatpush.xpose.msra.mxu0 %v864
        %1583 = vmatpush.xpose.msra.mxu0 %v861
        %1584 = vmatpush.xpose.msra.mxu0 %v858
        %1585 = vmatpush.xpose.msra.mxu0 %v855
        %1586 = vmatpush.xpose.msra.mxu0 %v852
        %1587 = vmatpush.xpose.msra.mxu0 %v849
        %1588 = vmatpush.xpose.msra.mxu0 %v846
        %1589 = vmatpush.xpose.msra.mxu0 %v843
        %1590 = vmatpush.xpose.msra.mxu0 %v840
        %1591 = vmatmul.f32.gmra.mxu0 %v729
        %v1592 = vpop.f32.mrf.mxu0
        %v1593 = vadd.f32 0.0, %v1592
        %1594 = vmatmul.f32.gmra.mxu0 %v732
        %v1595 = vpop.f32.mrf.mxu0
        %v1596 = vadd.f32 0.0, %v1595
        %1597 = vmatmul.f32.gmra.mxu0 %v735
        %v1598 = vpop.f32.mrf.mxu0
        %v1599 = vadd.f32 0.0, %v1598
        %1600 = vmatmul.f32.gmra.mxu0 %v738
        %v1601 = vpop.f32.mrf.mxu0
        %v1602 = vadd.f32 0.0, %v1601
        %1603 = vmatmul.f32.gmra.mxu0 %v741
        %v1604 = vpop.f32.mrf.mxu0
        %v1605 = vadd.f32 0.0, %v1604
        %1606 = vdwg.mxu0
        %1607 = vmatpush.xpose.msra.mxu0 %v933
        %1608 = vmatpush.xpose.msra.mxu0 %v930
        %1609 = vmatpush.xpose.msra.mxu0 %v927
        %1610 = vmatpush.xpose.msra.mxu0 %v924
        %1611 = vmatpush.xpose.msra.mxu0 %v921
        %1612 = vmatpush.xpose.msra.mxu0 %v918
        %1613 = vmatpush.xpose.msra.mxu0 %v915
        %1614 = vmatpush.xpose.msra.mxu0 %v912
        %1615 = vmatpush.xpose.msra.mxu0 %v909
        %1616 = vmatpush.xpose.msra.mxu0 %v906
        %1617 = vmatpush.xpose.msra.mxu0 %v903
        %1618 = vmatpush.xpose.msra.mxu0 %v900
        %1619 = vmatpush.xpose.msra.mxu0 %v897
        %1620 = vmatpush.xpose.msra.mxu0 %v894
        %1621 = vmatpush.xpose.msra.mxu0 %v891
        %1622 = vmatpush.xpose.msra.mxu0 %v888
        %1623 = vmatmul.f32.gmra.mxu0 %v729
        %v1624 = vpop.f32.mrf.mxu0
        %v1625 = vadd.f32 0.0, %v1624
        %1626 = vmatmul.f32.gmra.mxu0 %v732
        %v1627 = vpop.f32.mrf.mxu0
        %v1628 = vadd.f32 0.0, %v1627
        %1629 = vmatmul.f32.gmra.mxu0 %v735
        %v1630 = vpop.f32.mrf.mxu0
        %v1631 = vadd.f32 0.0, %v1630
        %1632 = vmatmul.f32.gmra.mxu0 %v738
        %v1633 = vpop.f32.mrf.mxu0
        %v1634 = vadd.f32 0.0, %v1633
        %1635 = vmatmul.f32.gmra.mxu0 %v741
        %v1636 = vpop.f32.mrf.mxu0
        %v1637 = vadd.f32 0.0, %v1636
        %1638 = vdwg.mxu0
        %1639 = vmatpush.xpose.msra.mxu0 %v981
        %1640 = vmatpush.xpose.msra.mxu0 %v978
        %1641 = vmatpush.xpose.msra.mxu0 %v975
        %1642 = vmatpush.xpose.msra.mxu0 %v972
        %1643 = vmatpush.xpose.msra.mxu0 %v969
        %1644 = vmatpush.xpose.msra.mxu0 %v966
        %1645 = vmatpush.xpose.msra.mxu0 %v963
        %1646 = vmatpush.xpose.msra.mxu0 %v960
        %1647 = vmatpush.xpose.msra.mxu0 %v957
        %1648 = vmatpush.xpose.msra.mxu0 %v954
        %1649 = vmatpush.xpose.msra.mxu0 %v951
        %1650 = vmatpush.xpose.msra.mxu0 %v948
        %1651 = vmatpush.xpose.msra.mxu0 %v945
        %1652 = vmatpush.xpose.msra.mxu0 %v942
        %1653 = vmatpush.xpose.msra.mxu0 %v939
        %1654 = vmatpush.xpose.msra.mxu0 %v936
        %1655 = vmatmul.f32.gmra.mxu0 %v729
        %v1656 = vpop.f32.mrf.mxu0
        %v1657 = vadd.f32 0.0, %v1656
        %1658 = vmatmul.f32.gmra.mxu0 %v732
        %v1659 = vpop.f32.mrf.mxu0
        %v1660 = vadd.f32 0.0, %v1659
        %1661 = vmatmul.f32.gmra.mxu0 %v735
        %v1662 = vpop.f32.mrf.mxu0
        %v1663 = vadd.f32 0.0, %v1662
        %1664 = vmatmul.f32.gmra.mxu0 %v738
        %v1665 = vpop.f32.mrf.mxu0
        %v1666 = vadd.f32 0.0, %v1665
        %1667 = vmatmul.f32.gmra.mxu0 %v741
        %v1668 = vpop.f32.mrf.mxu0
        %v1669 = vadd.f32 0.0, %v1668
        %1670 = vdwg.mxu0
        %1671 = vmatpush.xpose.msra.mxu0 %v1029
        %1672 = vmatpush.xpose.msra.mxu0 %v1026
        %1673 = vmatpush.xpose.msra.mxu0 %v1023
        %1674 = vmatpush.xpose.msra.mxu0 %v1020
        %1675 = vmatpush.xpose.msra.mxu0 %v1017
        %1676 = vmatpush.xpose.msra.mxu0 %v1014
        %1677 = vmatpush.xpose.msra.mxu0 %v1011
        %1678 = vmatpush.xpose.msra.mxu0 %v1008
        %1679 = vmatpush.xpose.msra.mxu0 %v1005
        %1680 = vmatpush.xpose.msra.mxu0 %v1002
        %1681 = vmatpush.xpose.msra.mxu0 %v999
        %1682 = vmatpush.xpose.msra.mxu0 %v996
        %1683 = vmatpush.xpose.msra.mxu0 %v993
        %1684 = vmatpush.xpose.msra.mxu0 %v990
        %1685 = vmatpush.xpose.msra.mxu0 %v987
        %1686 = vmatpush.xpose.msra.mxu0 %v984
        %1687 = vmatmul.f32.gmra.mxu0 %v729
        %v1688 = vpop.f32.mrf.mxu0
        %v1689 = vadd.f32 0.0, %v1688
        %1690 = vmatmul.f32.gmra.mxu0 %v732
        %v1691 = vpop.f32.mrf.mxu0
        %v1692 = vadd.f32 0.0, %v1691
        %1693 = vmatmul.f32.gmra.mxu0 %v735
        %v1694 = vpop.f32.mrf.mxu0
        %v1695 = vadd.f32 0.0, %v1694
        %1696 = vmatmul.f32.gmra.mxu0 %v738
        %v1697 = vpop.f32.mrf.mxu0
        %v1698 = vadd.f32 0.0, %v1697
        %1699 = vmatmul.f32.gmra.mxu0 %v741
        %v1700 = vpop.f32.mrf.mxu0
        %v1701 = vadd.f32 0.0, %v1700
        %1702 = vdwg.mxu0
        %1703 = vmatpush.xpose.msra.mxu0 %v1077
        %1704 = vmatpush.xpose.msra.mxu0 %v1074
        %1705 = vmatpush.xpose.msra.mxu0 %v1071
        %1706 = vmatpush.xpose.msra.mxu0 %v1068
        %1707 = vmatpush.xpose.msra.mxu0 %v1065
        %1708 = vmatpush.xpose.msra.mxu0 %v1062
        %1709 = vmatpush.xpose.msra.mxu0 %v1059
        %1710 = vmatpush.xpose.msra.mxu0 %v1056
        %1711 = vmatpush.xpose.msra.mxu0 %v1053
        %1712 = vmatpush.xpose.msra.mxu0 %v1050
        %1713 = vmatpush.xpose.msra.mxu0 %v1047
        %1714 = vmatpush.xpose.msra.mxu0 %v1044
        %1715 = vmatpush.xpose.msra.mxu0 %v1041
        %1716 = vmatpush.xpose.msra.mxu0 %v1038
        %1717 = vmatpush.xpose.msra.mxu0 %v1035
        %1718 = vmatpush.xpose.msra.mxu0 %v1032
        %1719 = vmatmul.f32.gmra.mxu0 %v729
        %v1720 = vpop.f32.mrf.mxu0
        %v1721 = vadd.f32 0.0, %v1720
        %1722 = vmatmul.f32.gmra.mxu0 %v732
        %v1723 = vpop.f32.mrf.mxu0
        %v1724 = vadd.f32 0.0, %v1723
        %1725 = vmatmul.f32.gmra.mxu0 %v735
        %v1726 = vpop.f32.mrf.mxu0
        %v1727 = vadd.f32 0.0, %v1726
        %1728 = vmatmul.f32.gmra.mxu0 %v738
        %v1729 = vpop.f32.mrf.mxu0
        %v1730 = vadd.f32 0.0, %v1729
        %1731 = vmatmul.f32.gmra.mxu0 %v741
        %v1732 = vpop.f32.mrf.mxu0
        %v1733 = vadd.f32 0.0, %v1732
        %1734 = vdwg.mxu0
        %1735 = vmatpush.xpose.msra.mxu0 %v1125
        %1736 = vmatpush.xpose.msra.mxu0 %v1122
        %1737 = vmatpush.xpose.msra.mxu0 %v1119
        %1738 = vmatpush.xpose.msra.mxu0 %v1116
        %1739 = vmatpush.xpose.msra.mxu0 %v1113
        %1740 = vmatpush.xpose.msra.mxu0 %v1110
        %1741 = vmatpush.xpose.msra.mxu0 %v1107
        %1742 = vmatpush.xpose.msra.mxu0 %v1104
        %1743 = vmatpush.xpose.msra.mxu0 %v1101
        %1744 = vmatpush.xpose.msra.mxu0 %v1098
        %1745 = vmatpush.xpose.msra.mxu0 %v1095
        %1746 = vmatpush.xpose.msra.mxu0 %v1092
        %1747 = vmatpush.xpose.msra.mxu0 %v1089
        %1748 = vmatpush.xpose.msra.mxu0 %v1086
        %1749 = vmatpush.xpose.msra.mxu0 %v1083
        %1750 = vmatpush.xpose.msra.mxu0 %v1080
        %1751 = vmatmul.f32.gmra.mxu0 %v729
        %v1752 = vpop.f32.mrf.mxu0
        %v1753 = vadd.f32 0.0, %v1752
        %1754 = vmatmul.f32.gmra.mxu0 %v732
        %v1755 = vpop.f32.mrf.mxu0
        %v1756 = vadd.f32 0.0, %v1755
        %1757 = vmatmul.f32.gmra.mxu0 %v735
        %v1758 = vpop.f32.mrf.mxu0
        %v1759 = vadd.f32 0.0, %v1758
        %1760 = vmatmul.f32.gmra.mxu0 %v738
        %v1761 = vpop.f32.mrf.mxu0
        %v1762 = vadd.f32 0.0, %v1761
        %1763 = vmatmul.f32.gmra.mxu0 %v741
        %v1764 = vpop.f32.mrf.mxu0
        %v1765 = vadd.f32 0.0, %v1764
        %1766 = vdwg.mxu0
        %1767 = vmatpush.xpose.msra.mxu0 %v1173
        %1768 = vmatpush.xpose.msra.mxu0 %v1170
        %1769 = vmatpush.xpose.msra.mxu0 %v1167
        %1770 = vmatpush.xpose.msra.mxu0 %v1164
        %1771 = vmatpush.xpose.msra.mxu0 %v1161
        %1772 = vmatpush.xpose.msra.mxu0 %v1158
        %1773 = vmatpush.xpose.msra.mxu0 %v1155
        %1774 = vmatpush.xpose.msra.mxu0 %v1152
        %1775 = vmatpush.xpose.msra.mxu0 %v1149
        %1776 = vmatpush.xpose.msra.mxu0 %v1146
        %1777 = vmatpush.xpose.msra.mxu0 %v1143
        %1778 = vmatpush.xpose.msra.mxu0 %v1140
        %1779 = vmatpush.xpose.msra.mxu0 %v1137
        %1780 = vmatpush.xpose.msra.mxu0 %v1134
        %1781 = vmatpush.xpose.msra.mxu0 %v1131
        %1782 = vmatpush.xpose.msra.mxu0 %v1128
        %1783 = vmatmul.f32.gmra.mxu0 %v729
        %v1784 = vpop.f32.mrf.mxu0
        %v1785 = vadd.f32 0.0, %v1784
        %1786 = vmatmul.f32.gmra.mxu0 %v732
        %v1787 = vpop.f32.mrf.mxu0
        %v1788 = vadd.f32 0.0, %v1787
        %1789 = vmatmul.f32.gmra.mxu0 %v735
        %v1790 = vpop.f32.mrf.mxu0
        %v1791 = vadd.f32 0.0, %v1790
        %1792 = vmatmul.f32.gmra.mxu0 %v738
        %v1793 = vpop.f32.mrf.mxu0
        %v1794 = vadd.f32 0.0, %v1793
        %1795 = vmatmul.f32.gmra.mxu0 %v741
        %v1796 = vpop.f32.mrf.mxu0
        %v1797 = vadd.f32 0.0, %v1796
        %1798 = vdwg.mxu0
        %1799 = vmatpush.xpose.msra.mxu0 %v1221
        %1800 = vmatpush.xpose.msra.mxu0 %v1218
        %1801 = vmatpush.xpose.msra.mxu0 %v1215
        %1802 = vmatpush.xpose.msra.mxu0 %v1212
        %1803 = vmatpush.xpose.msra.mxu0 %v1209
        %1804 = vmatpush.xpose.msra.mxu0 %v1206
        %1805 = vmatpush.xpose.msra.mxu0 %v1203
        %1806 = vmatpush.xpose.msra.mxu0 %v1200
        %1807 = vmatpush.xpose.msra.mxu0 %v1197
        %1808 = vmatpush.xpose.msra.mxu0 %v1194
        %1809 = vmatpush.xpose.msra.mxu0 %v1191
        %1810 = vmatpush.xpose.msra.mxu0 %v1188
        %1811 = vmatpush.xpose.msra.mxu0 %v1185
        %1812 = vmatpush.xpose.msra.mxu0 %v1182
        %1813 = vmatpush.xpose.msra.mxu0 %v1179
        %1814 = vmatpush.xpose.msra.mxu0 %v1176
        %1815 = vmatmul.f32.gmra.mxu0 %v729
        %v1816 = vpop.f32.mrf.mxu0
        %v1817 = vadd.f32 0.0, %v1816
        %1818 = vmatmul.f32.gmra.mxu0 %v732
        %v1819 = vpop.f32.mrf.mxu0
        %v1820 = vadd.f32 0.0, %v1819
        %1821 = vmatmul.f32.gmra.mxu0 %v735
        %v1822 = vpop.f32.mrf.mxu0
        %v1823 = vadd.f32 0.0, %v1822
        %1824 = vmatmul.f32.gmra.mxu0 %v738
        %v1825 = vpop.f32.mrf.mxu0
        %v1826 = vadd.f32 0.0, %v1825
        %1827 = vmatmul.f32.gmra.mxu0 %v741
        %v1828 = vpop.f32.mrf.mxu0
        %v1829 = vadd.f32 0.0, %v1828
        %1830 = vdwg.mxu0
        %1831 = vmatpush.xpose.msra.mxu0 %v1269
        %1832 = vmatpush.xpose.msra.mxu0 %v1266
        %1833 = vmatpush.xpose.msra.mxu0 %v1263
        %1834 = vmatpush.xpose.msra.mxu0 %v1260
        %1835 = vmatpush.xpose.msra.mxu0 %v1257
        %1836 = vmatpush.xpose.msra.mxu0 %v1254
        %1837 = vmatpush.xpose.msra.mxu0 %v1251
        %1838 = vmatpush.xpose.msra.mxu0 %v1248
        %1839 = vmatpush.xpose.msra.mxu0 %v1245
        %1840 = vmatpush.xpose.msra.mxu0 %v1242
        %1841 = vmatpush.xpose.msra.mxu0 %v1239
        %1842 = vmatpush.xpose.msra.mxu0 %v1236
        %1843 = vmatpush.xpose.msra.mxu0 %v1233
        %1844 = vmatpush.xpose.msra.mxu0 %v1230
        %1845 = vmatpush.xpose.msra.mxu0 %v1227
        %1846 = vmatpush.xpose.msra.mxu0 %v1224
        %1847 = vmatmul.f32.gmra.mxu0 %v729
        %v1848 = vpop.f32.mrf.mxu0
        %v1849 = vadd.f32 0.0, %v1848
        %1850 = vmatmul.f32.gmra.mxu0 %v732
        %v1851 = vpop.f32.mrf.mxu0
        %v1852 = vadd.f32 0.0, %v1851
        %1853 = vmatmul.f32.gmra.mxu0 %v735
        %v1854 = vpop.f32.mrf.mxu0
        %v1855 = vadd.f32 0.0, %v1854
        %1856 = vmatmul.f32.gmra.mxu0 %v738
        %v1857 = vpop.f32.mrf.mxu0
        %v1858 = vadd.f32 0.0, %v1857
        %1859 = vmatmul.f32.gmra.mxu0 %v741
        %v1860 = vpop.f32.mrf.mxu0
        %v1861 = vadd.f32 0.0, %v1860
        %1862 = vdwg.mxu0
        %1863 = vmatpush.xpose.msra.mxu0 %v1317
        %1864 = vmatpush.xpose.msra.mxu0 %v1314
        %1865 = vmatpush.xpose.msra.mxu0 %v1311
        %1866 = vmatpush.xpose.msra.mxu0 %v1308
        %1867 = vmatpush.xpose.msra.mxu0 %v1305
        %1868 = vmatpush.xpose.msra.mxu0 %v1302
        %1869 = vmatpush.xpose.msra.mxu0 %v1299
        %1870 = vmatpush.xpose.msra.mxu0 %v1296
        %1871 = vmatpush.xpose.msra.mxu0 %v1293
        %1872 = vmatpush.xpose.msra.mxu0 %v1290
        %1873 = vmatpush.xpose.msra.mxu0 %v1287
        %1874 = vmatpush.xpose.msra.mxu0 %v1284
        %1875 = vmatpush.xpose.msra.mxu0 %v1281
        %1876 = vmatpush.xpose.msra.mxu0 %v1278
        %1877 = vmatpush.xpose.msra.mxu0 %v1275
        %1878 = vmatpush.xpose.msra.mxu0 %v1272
        %1879 = vmatmul.f32.gmra.mxu0 %v729
        %v1880 = vpop.f32.mrf.mxu0
        %v1881 = vadd.f32 0.0, %v1880
        %1882 = vmatmul.f32.gmra.mxu0 %v732
        %v1883 = vpop.f32.mrf.mxu0
        %v1884 = vadd.f32 0.0, %v1883
        %1885 = vmatmul.f32.gmra.mxu0 %v735
        %v1886 = vpop.f32.mrf.mxu0
        %v1887 = vadd.f32 0.0, %v1886
        %1888 = vmatmul.f32.gmra.mxu0 %v738
        %v1889 = vpop.f32.mrf.mxu0
        %v1890 = vadd.f32 0.0, %v1889
        %1891 = vmatmul.f32.gmra.mxu0 %v741
        %v1892 = vpop.f32.mrf.mxu0
        %v1893 = vadd.f32 0.0, %v1892
        %1894 = vdwg.mxu0
        %1895 = vmatpush.xpose.msra.mxu0 %v1365
        %1896 = vmatpush.xpose.msra.mxu0 %v1362
        %1897 = vmatpush.xpose.msra.mxu0 %v1359
        %1898 = vmatpush.xpose.msra.mxu0 %v1356
        %1899 = vmatpush.xpose.msra.mxu0 %v1353
        %1900 = vmatpush.xpose.msra.mxu0 %v1350
        %1901 = vmatpush.xpose.msra.mxu0 %v1347
        %1902 = vmatpush.xpose.msra.mxu0 %v1344
        %1903 = vmatpush.xpose.msra.mxu0 %v1341
        %1904 = vmatpush.xpose.msra.mxu0 %v1338
        %1905 = vmatpush.xpose.msra.mxu0 %v1335
        %1906 = vmatpush.xpose.msra.mxu0 %v1332
        %1907 = vmatpush.xpose.msra.mxu0 %v1329
        %1908 = vmatpush.xpose.msra.mxu0 %v1326
        %1909 = vmatpush.xpose.msra.mxu0 %v1323
        %1910 = vmatpush.xpose.msra.mxu0 %v1320
        %1911 = vmatmul.f32.gmra.mxu0 %v729
        %v1912 = vpop.f32.mrf.mxu0
        %v1913 = vadd.f32 0.0, %v1912
        %1914 = vmatmul.f32.gmra.mxu0 %v732
        %v1915 = vpop.f32.mrf.mxu0
        %v1916 = vadd.f32 0.0, %v1915
        %1917 = vmatmul.f32.gmra.mxu0 %v735
        %v1918 = vpop.f32.mrf.mxu0
        %v1919 = vadd.f32 0.0, %v1918
        %1920 = vmatmul.f32.gmra.mxu0 %v738
        %v1921 = vpop.f32.mrf.mxu0
        %v1922 = vadd.f32 0.0, %v1921
        %1923 = vmatmul.f32.gmra.mxu0 %v741
        %v1924 = vpop.f32.mrf.mxu0
        %v1925 = vadd.f32 0.0, %v1924
        %1926 = vdwg.mxu0
        %1927 = vmatpush.xpose.msra.mxu0 %v1413
        %1928 = vmatpush.xpose.msra.mxu0 %v1410
        %1929 = vmatpush.xpose.msra.mxu0 %v1407
        %1930 = vmatpush.xpose.msra.mxu0 %v1404
        %1931 = vmatpush.xpose.msra.mxu0 %v1401
        %1932 = vmatpush.xpose.msra.mxu0 %v1398
        %1933 = vmatpush.xpose.msra.mxu0 %v1395
        %1934 = vmatpush.xpose.msra.mxu0 %v1392
        %1935 = vmatpush.xpose.msra.mxu0 %v1389
        %1936 = vmatpush.xpose.msra.mxu0 %v1386
        %1937 = vmatpush.xpose.msra.mxu0 %v1383
        %1938 = vmatpush.xpose.msra.mxu0 %v1380
        %1939 = vmatpush.xpose.msra.mxu0 %v1377
        %1940 = vmatpush.xpose.msra.mxu0 %v1374
        %1941 = vmatpush.xpose.msra.mxu0 %v1371
        %1942 = vmatpush.xpose.msra.mxu0 %v1368
        %1943 = vmatmul.f32.gmra.mxu0 %v729
        %v1944 = vpop.f32.mrf.mxu0
        %v1945 = vadd.f32 0.0, %v1944
        %1946 = vmatmul.f32.gmra.mxu0 %v732
        %v1947 = vpop.f32.mrf.mxu0
        %v1948 = vadd.f32 0.0, %v1947
        %1949 = vmatmul.f32.gmra.mxu0 %v735
        %v1950 = vpop.f32.mrf.mxu0
        %v1951 = vadd.f32 0.0, %v1950
        %1952 = vmatmul.f32.gmra.mxu0 %v738
        %v1953 = vpop.f32.mrf.mxu0
        %v1954 = vadd.f32 0.0, %v1953
        %1955 = vmatmul.f32.gmra.mxu0 %v741
        %v1956 = vpop.f32.mrf.mxu0
        %v1957 = vadd.f32 0.0, %v1956
        %1958 = vdwg.mxu0
        %1959 = vmatpush.xpose.msra.mxu0 %v1461
        %1960 = vmatpush.xpose.msra.mxu0 %v1458
        %1961 = vmatpush.xpose.msra.mxu0 %v1455
        %1962 = vmatpush.xpose.msra.mxu0 %v1452
        %1963 = vmatpush.xpose.msra.mxu0 %v1449
        %1964 = vmatpush.xpose.msra.mxu0 %v1446
        %1965 = vmatpush.xpose.msra.mxu0 %v1443
        %1966 = vmatpush.xpose.msra.mxu0 %v1440
        %1967 = vmatpush.xpose.msra.mxu0 %v1437
        %1968 = vmatpush.xpose.msra.mxu0 %v1434
        %1969 = vmatpush.xpose.msra.mxu0 %v1431
        %1970 = vmatpush.xpose.msra.mxu0 %v1428
        %1971 = vmatpush.xpose.msra.mxu0 %v1425
        %1972 = vmatpush.xpose.msra.mxu0 %v1422
        %1973 = vmatpush.xpose.msra.mxu0 %v1419
        %1974 = vmatpush.xpose.msra.mxu0 %v1416
        %1975 = vmatmul.f32.gmra.mxu0 %v729
        %v1976 = vpop.f32.mrf.mxu0
        %v1977 = vadd.f32 0.0, %v1976
        %1978 = vmatmul.f32.gmra.mxu0 %v732
        %v1979 = vpop.f32.mrf.mxu0
        %v1980 = vadd.f32 0.0, %v1979
        %1981 = vmatmul.f32.gmra.mxu0 %v735
        %v1982 = vpop.f32.mrf.mxu0
        %v1983 = vadd.f32 0.0, %v1982
        %1984 = vmatmul.f32.gmra.mxu0 %v738
        %v1985 = vpop.f32.mrf.mxu0
        %v1986 = vadd.f32 0.0, %v1985
        %1987 = vmatmul.f32.gmra.mxu0 %v741
        %v1988 = vpop.f32.mrf.mxu0
        %v1989 = vadd.f32 0.0, %v1988
        %1990 = vdwg.mxu0
        %1991 = vmatpush.xpose.msra.mxu0 %v1509
        %1992 = vmatpush.xpose.msra.mxu0 %v1506
        %1993 = vmatpush.xpose.msra.mxu0 %v1503
        %1994 = vmatpush.xpose.msra.mxu0 %v1500
        %1995 = vmatpush.xpose.msra.mxu0 %v1497
        %1996 = vmatpush.xpose.msra.mxu0 %v1494
        %1997 = vmatpush.xpose.msra.mxu0 %v1491
        %1998 = vmatpush.xpose.msra.mxu0 %v1488
        %1999 = vmatpush.xpose.msra.mxu0 %v1485
        %2000 = vmatpush.xpose.msra.mxu0 %v1482
        %2001 = vmatpush.xpose.msra.mxu0 %v1479
        %2002 = vmatpush.xpose.msra.mxu0 %v1476
        %2003 = vmatpush.xpose.msra.mxu0 %v1473
        %2004 = vmatpush.xpose.msra.mxu0 %v1470
        %2005 = vmatpush.xpose.msra.mxu0 %v1467
        %2006 = vmatpush.xpose.msra.mxu0 %v1464
        %2007 = vmatmul.f32.gmra.mxu0 %v729
        %v2008 = vpop.f32.mrf.mxu0
        %v2009 = vadd.f32 0.0, %v2008
        %2010 = vmatmul.f32.gmra.mxu0 %v732
        %v2011 = vpop.f32.mrf.mxu0
        %v2012 = vadd.f32 0.0, %v2011
        %2013 = vmatmul.f32.gmra.mxu0 %v735
        %v2014 = vpop.f32.mrf.mxu0
        %v2015 = vadd.f32 0.0, %v2014
        %2016 = vmatmul.f32.gmra.mxu0 %v738
        %v2017 = vpop.f32.mrf.mxu0
        %v2018 = vadd.f32 0.0, %v2017
        %2019 = vmatmul.f32.gmra.mxu0 %v741
        %v2020 = vpop.f32.mrf.mxu0
        %v2021 = vadd.f32 0.0, %v2020
        %2022 = vdwg.mxu0
        %v2023 = vld [vmem:[%s2] sm:$0xff]
        %v2024 = vld [vmem:[%s2 + $0x8] sm:$0xff]
        %v2025 = vld [vmem:[%s2 + $0x10] sm:$0xff]
        %v2026 = vld [vmem:[%s2 + $0x18] sm:$0xff]
        %v2028 = vsel %vm727, %v2023, 0
        %v2031 = vsel %vm727, %v2024, 0
        %v2034 = vsel %vm727, %v2025, 0
        %v2037 = vsel %vm727, %v2026, 0
        %v2040 = vsel %vm727, %v466, 0
        %v2043 = vsel %vm727, %v467, 0
        %v2046 = vsel %vm727, %v468, 0
        %v2049 = vsel %vm727, %v469, 0
        %v2052 = vsel %vm727, %v470, 0
        %v2055 = vsel %vm727, %v471, 0
        %v2058 = vsel %vm727, %v472, 0
        %v2061 = vsel %vm727, %v473, 0
        %v2064 = vsel %vm727, %v474, 0
        %v2067 = vsel %vm727, %v475, 0
        %v2070 = vsel %vm727, %v476, 0
        %v2073 = vsel %vm727, %v477, 0
        %v2076 = vsel %vm727, %v478, 0
        %v2079 = vsel %vm727, %v479, 0
        %v2082 = vsel %vm727, %v480, 0
        %v2085 = vsel %vm727, %v481, 0
        %v2088 = vsel %vm727, %v482, 0
        %v2091 = vsel %vm727, %v483, 0
        %v2094 = vsel %vm727, %v484, 0
        %v2097 = vsel %vm727, %v485, 0
        %v2100 = vsel %vm727, %v486, 0
        %v2103 = vsel %vm727, %v487, 0
        %v2106 = vsel %vm727, %v488, 0
        %v2109 = vsel %vm727, %v489, 0
        %v2112 = vsel %vm727, %v490, 0
        %v2115 = vsel %vm727, %v491, 0
        %v2118 = vsel %vm727, %v492, 0
        %v2121 = vsel %vm727, %v493, 0
        %v2124 = vsel %vm727, %v494, 0
        %v2127 = vsel %vm727, %v495, 0
        %v2130 = vsel %vm727, %v496, 0
        %v2133 = vsel %vm727, %v497, 0
        %v2136 = vsel %vm727, %v498, 0
        %v2139 = vsel %vm727, %v499, 0
        %v2142 = vsel %vm727, %v500, 0
        %v2145 = vsel %vm727, %v501, 0
        %v2148 = vsel %vm727, %v502, 0
        %v2151 = vsel %vm727, %v503, 0
        %v2154 = vsel %vm727, %v504, 0
        %v2157 = vsel %vm727, %v505, 0
        %v2160 = vsel %vm727, %v506, 0
        %v2163 = vsel %vm727, %v507, 0
        %v2166 = vsel %vm727, %v508, 0
        %v2169 = vsel %vm727, %v509, 0
        %v2172 = vsel %vm727, %v510, 0
        %v2175 = vsel %vm727, %v511, 0
        %v2178 = vsel %vm727, %v512, 0
        %v2181 = vsel %vm727, %v513, 0
        %v2184 = vsel %vm727, %v514, 0
        %v2187 = vsel %vm727, %v515, 0
        %v2190 = vsel %vm727, %v516, 0
        %v2193 = vsel %vm727, %v517, 0
        %v2196 = vsel %vm727, %v518, 0
        %v2199 = vsel %vm727, %v519, 0
        %v2202 = vsel %vm727, %v520, 0
        %v2205 = vsel %vm727, %v521, 0
        %v2208 = vsel %vm727, %v522, 0
        %v2211 = vsel %vm727, %v523, 0
        %v2214 = vsel %vm727, %v524, 0
        %v2217 = vsel %vm727, %v525, 0
        %v2220 = vsel %vm727, %v526, 0
        %v2223 = vsel %vm727, %v527, 0
        %v2226 = vsel %vm727, %v528, 0
        %v2229 = vsel %vm727, %v529, 0
        %v2232 = vsel %vm727, %v530, 0
        %v2235 = vsel %vm727, %v531, 0
        %v2238 = vsel %vm727, %v532, 0
        %v2241 = vsel %vm727, %v533, 0
        %v2244 = vsel %vm727, %v534, 0
        %v2247 = vsel %vm727, %v535, 0
        %v2250 = vsel %vm727, %v536, 0
        %v2253 = vsel %vm727, %v537, 0
        %v2256 = vsel %vm727, %v538, 0
        %v2259 = vsel %vm727, %v539, 0
        %v2262 = vsel %vm727, %v540, 0
        %v2265 = vsel %vm727, %v541, 0
        %v2268 = vsel %vm727, %v542, 0
        %v2271 = vsel %vm727, %v543, 0
        %v2274 = vsel %vm727, %v544, 0
        %v2277 = vsel %vm727, %v545, 0
        %v2280 = vsel %vm727, %v546, 0
        %v2283 = vsel %vm727, %v547, 0
        %v2286 = vsel %vm727, %v548, 0
        %v2289 = vsel %vm727, %v549, 0
        %v2292 = vsel %vm727, %v550, 0
        %v2295 = vsel %vm727, %v551, 0
        %v2298 = vsel %vm727, %v552, 0
        %v2301 = vsel %vm727, %v553, 0
        %v2304 = vsel %vm727, %v554, 0
        %v2307 = vsel %vm727, %v555, 0
        %v2310 = vsel %vm727, %v556, 0
        %v2313 = vsel %vm727, %v557, 0
        %v2316 = vsel %vm727, %v558, 0
        %v2319 = vsel %vm727, %v559, 0
        %v2322 = vsel %vm727, %v560, 0
        %v2325 = vsel %vm727, %v561, 0
        %v2328 = vsel %vm727, %v562, 0
        %v2331 = vsel %vm727, %v563, 0
        %v2334 = vsel %vm727, %v564, 0
        %v2337 = vsel %vm727, %v565, 0
        %v2340 = vsel %vm727, %v566, 0
        %v2343 = vsel %vm727, %v567, 0
        %v2346 = vsel %vm727, %v568, 0
        %v2349 = vsel %vm727, %v569, 0
        %v2352 = vsel %vm727, %v570, 0
        %v2355 = vsel %vm727, %v571, 0
        %v2358 = vsel %vm727, %v572, 0
        %v2361 = vsel %vm727, %v573, 0
        %v2364 = vsel %vm727, %v574, 0
        %v2367 = vsel %vm727, %v575, 0
        %v2370 = vsel %vm727, %v576, 0
        %v2373 = vsel %vm727, %v577, 0
        %v2376 = vsel %vm727, %v578, 0
        %v2379 = vsel %vm727, %v579, 0
        %v2382 = vsel %vm727, %v580, 0
        %v2385 = vsel %vm727, %v581, 0
        %v2388 = vsel %vm727, %v582, 0
        %v2391 = vsel %vm727, %v583, 0
        %v2394 = vsel %vm727, %v584, 0
        %v2397 = vsel %vm727, %v585, 0
        %v2400 = vsel %vm727, %v586, 0
        %v2403 = vsel %vm727, %v587, 0
        %v2406 = vsel %vm727, %v588, 0
        %v2409 = vsel %vm727, %v589, 0
        %v2412 = vsel %vm727, %v590, 0
        %v2415 = vsel %vm727, %v591, 0
        %v2418 = vsel %vm727, %v592, 0
        %v2421 = vsel %vm727, %v593, 0
        %v2424 = vsel %vm727, %v594, 0
        %v2427 = vsel %vm727, %v595, 0
        %v2430 = vsel %vm727, %v596, 0
        %v2433 = vsel %vm727, %v597, 0
        %v2436 = vsel %vm727, %v598, 0
        %v2439 = vsel %vm727, %v599, 0
        %v2442 = vsel %vm727, %v600, 0
        %v2445 = vsel %vm727, %v601, 0
        %v2448 = vsel %vm727, %v602, 0
        %v2451 = vsel %vm727, %v603, 0
        %v2454 = vsel %vm727, %v604, 0
        %v2457 = vsel %vm727, %v605, 0
        %v2460 = vsel %vm727, %v606, 0
        %v2463 = vsel %vm727, %v607, 0
        %v2466 = vsel %vm727, %v608, 0
        %v2469 = vsel %vm727, %v609, 0
        %v2472 = vsel %vm727, %v610, 0
        %v2475 = vsel %vm727, %v611, 0
        %v2478 = vsel %vm727, %v612, 0
        %v2481 = vsel %vm727, %v613, 0
        %v2484 = vsel %vm727, %v614, 0
        %v2487 = vsel %vm727, %v615, 0
        %v2490 = vsel %vm727, %v616, 0
        %v2493 = vsel %vm727, %v617, 0
        %v2496 = vsel %vm727, %v618, 0
        %v2499 = vsel %vm727, %v619, 0
        %v2502 = vsel %vm727, %v620, 0
        %v2505 = vsel %vm727, %v621, 0
        %v2508 = vsel %vm727, %v622, 0
        %v2511 = vsel %vm727, %v623, 0
        %v2514 = vsel %vm727, %v624, 0
        %v2517 = vsel %vm727, %v625, 0
        %v2520 = vsel %vm727, %v626, 0
        %v2523 = vsel %vm727, %v627, 0
        %v2526 = vsel %vm727, %v628, 0
        %v2529 = vsel %vm727, %v629, 0
        %v2532 = vsel %vm727, %v630, 0
        %v2535 = vsel %vm727, %v631, 0
        %v2538 = vsel %vm727, %v632, 0
        %v2541 = vsel %vm727, %v633, 0
        %v2544 = vsel %vm727, %v634, 0
        %v2547 = vsel %vm727, %v635, 0
        %v2550 = vsel %vm727, %v636, 0
        %v2553 = vsel %vm727, %v637, 0
        %v2556 = vsel %vm727, %v638, 0
        %v2559 = vsel %vm727, %v639, 0
        %v2562 = vsel %vm727, %v640, 0
        %v2565 = vsel %vm727, %v641, 0
        %v2568 = vsel %vm727, %v642, 0
        %v2571 = vsel %vm727, %v643, 0
        %v2574 = vsel %vm727, %v644, 0
        %v2577 = vsel %vm727, %v645, 0
        %v2580 = vsel %vm727, %v646, 0
        %v2583 = vsel %vm727, %v647, 0
        %v2586 = vsel %vm727, %v648, 0
        %v2589 = vsel %vm727, %v649, 0
        %v2592 = vsel %vm727, %v650, 0
        %v2595 = vsel %vm727, %v651, 0
        %v2598 = vsel %vm727, %v652, 0
        %v2601 = vsel %vm727, %v653, 0
        %v2604 = vsel %vm727, %v654, 0
        %v2607 = vsel %vm727, %v655, 0
        %v2610 = vsel %vm727, %v656, 0
        %v2613 = vsel %vm727, %v657, 0
        %v2616 = vsel %vm727, %v658, 0
        %v2619 = vsel %vm727, %v659, 0
        %v2622 = vsel %vm727, %v660, 0
        %v2625 = vsel %vm727, %v661, 0
        %v2628 = vsel %vm727, %v662, 0
        %v2631 = vsel %vm727, %v663, 0
        %v2634 = vsel %vm727, %v664, 0
        %v2637 = vsel %vm727, %v665, 0
        %v2640 = vsel %vm727, %v666, 0
        %v2643 = vsel %vm727, %v667, 0
        %v2646 = vsel %vm727, %v668, 0
        %v2649 = vsel %vm727, %v669, 0
        %v2652 = vsel %vm727, %v670, 0
        %v2655 = vsel %vm727, %v671, 0
        %v2658 = vsel %vm727, %v672, 0
        %v2661 = vsel %vm727, %v673, 0
        %v2664 = vsel %vm727, %v674, 0
        %v2667 = vsel %vm727, %v675, 0
        %v2670 = vsel %vm727, %v676, 0
        %v2673 = vsel %vm727, %v677, 0
        %v2676 = vsel %vm727, %v678, 0
        %v2679 = vsel %vm727, %v679, 0
        %v2682 = vsel %vm727, %v680, 0
        %v2685 = vsel %vm727, %v681, 0
        %v2688 = vsel %vm727, %v682, 0
        %v2691 = vsel %vm727, %v683, 0
        %v2694 = vsel %vm727, %v684, 0
        %v2697 = vsel %vm727, %v685, 0
        %v2700 = vsel %vm727, %v686, 0
        %v2703 = vsel %vm727, %v687, 0
        %v2706 = vsel %vm727, %v688, 0
        %v2709 = vsel %vm727, %v689, 0
        %v2712 = vsel %vm727, %v690, 0
        %v2715 = vsel %vm727, %v691, 0
        %v2718 = vsel %vm727, %v692, 0
        %v2721 = vsel %vm727, %v693, 0
        %v2724 = vsel %vm727, %v694, 0
        %v2727 = vsel %vm727, %v695, 0
        %v2730 = vsel %vm727, %v696, 0
        %v2733 = vsel %vm727, %v697, 0
        %v2736 = vsel %vm727, %v698, 0
        %v2739 = vsel %vm727, %v699, 0
        %v2742 = vsel %vm727, %v700, 0
        %v2745 = vsel %vm727, %v701, 0
        %v2748 = vsel %vm727, %v702, 0
        %v2751 = vsel %vm727, %v703, 0
        %v2754 = vsel %vm727, %v704, 0
        %v2757 = vsel %vm727, %v705, 0
        %v2760 = vsel %vm727, %v706, 0
        %v2763 = vsel %vm727, %v707, 0
        %v2766 = vsel %vm727, %v708, 0
        %v2769 = vsel %vm727, %v709, 0
        %v2772 = vsel %vm727, %v710, 0
        %v2775 = vsel %vm727, %v711, 0
        %v2778 = vsel %vm727, %v712, 0
        %v2781 = vsel %vm727, %v713, 0
        %v2784 = vsel %vm727, %v714, 0
        %v2787 = vsel %vm727, %v715, 0
        %v2790 = vsel %vm727, %v716, 0
        %v2793 = vsel %vm727, %v717, 0
        %v2796 = vsel %vm727, %v718, 0
        %v2799 = vsel %vm727, %v719, 0
        %v2802 = vsel %vm727, %v720, 0
        %v2805 = vsel %vm727, %v721, 0
        %2807 = vmatpush.xpose.msra.mxu0 %v2085
        %2808 = vmatpush.xpose.msra.mxu0 %v2082
        %2809 = vmatpush.xpose.msra.mxu0 %v2079
        %2810 = vmatpush.xpose.msra.mxu0 %v2076
        %2811 = vmatpush.xpose.msra.mxu0 %v2073
        %2812 = vmatpush.xpose.msra.mxu0 %v2070
        %2813 = vmatpush.xpose.msra.mxu0 %v2067
        %2814 = vmatpush.xpose.msra.mxu0 %v2064
        %2815 = vmatpush.xpose.msra.mxu0 %v2061
        %2816 = vmatpush.xpose.msra.mxu0 %v2058
        %2817 = vmatpush.xpose.msra.mxu0 %v2055
        %2818 = vmatpush.xpose.msra.mxu0 %v2052
        %2819 = vmatpush.xpose.msra.mxu0 %v2049
        %2820 = vmatpush.xpose.msra.mxu0 %v2046
        %2821 = vmatpush.xpose.msra.mxu0 %v2043
        %2822 = vmatpush.xpose.msra.mxu0 %v2040
        %2823 = vmatmul.f32.gmra.mxu0 %v2028
        %v2824 = vpop.f32.mrf.mxu0
        %v2825 = vadd.f32 0.0, %v2824
        %2826 = vmatmul.f32.gmra.mxu0 %v2031
        %v2827 = vpop.f32.mrf.mxu0
        %v2828 = vadd.f32 0.0, %v2827
        %2829 = vmatmul.f32.gmra.mxu0 %v2034
        %v2830 = vpop.f32.mrf.mxu0
        %v2831 = vadd.f32 0.0, %v2830
        %2832 = vmatmul.f32.gmra.mxu0 %v2037
        %v2833 = vpop.f32.mrf.mxu0
        %v2834 = vadd.f32 0.0, %v2833
        %2835 = vdwg.mxu0
        %2836 = vmatpush.xpose.msra.mxu0 %v2133
        %2837 = vmatpush.xpose.msra.mxu0 %v2130
        %2838 = vmatpush.xpose.msra.mxu0 %v2127
        %2839 = vmatpush.xpose.msra.mxu0 %v2124
        %2840 = vmatpush.xpose.msra.mxu0 %v2121
        %2841 = vmatpush.xpose.msra.mxu0 %v2118
        %2842 = vmatpush.xpose.msra.mxu0 %v2115
        %2843 = vmatpush.xpose.msra.mxu0 %v2112
        %2844 = vmatpush.xpose.msra.mxu0 %v2109
        %2845 = vmatpush.xpose.msra.mxu0 %v2106
        %2846 = vmatpush.xpose.msra.mxu0 %v2103
        %2847 = vmatpush.xpose.msra.mxu0 %v2100
        %2848 = vmatpush.xpose.msra.mxu0 %v2097
        %2849 = vmatpush.xpose.msra.mxu0 %v2094
        %2850 = vmatpush.xpose.msra.mxu0 %v2091
        %2851 = vmatpush.xpose.msra.mxu0 %v2088
        %2852 = vmatmul.f32.gmra.mxu0 %v2028
        %v2853 = vpop.f32.mrf.mxu0
        %v2854 = vadd.f32 0.0, %v2853
        %2855 = vmatmul.f32.gmra.mxu0 %v2031
        %v2856 = vpop.f32.mrf.mxu0
        %v2857 = vadd.f32 0.0, %v2856
        %2858 = vmatmul.f32.gmra.mxu0 %v2034
        %v2859 = vpop.f32.mrf.mxu0
        %v2860 = vadd.f32 0.0, %v2859
        %2861 = vmatmul.f32.gmra.mxu0 %v2037
        %v2862 = vpop.f32.mrf.mxu0
        %v2863 = vadd.f32 0.0, %v2862
        %2864 = vdwg.mxu0
        %2865 = vmatpush.xpose.msra.mxu0 %v2181
        %2866 = vmatpush.xpose.msra.mxu0 %v2178
        %2867 = vmatpush.xpose.msra.mxu0 %v2175
        %2868 = vmatpush.xpose.msra.mxu0 %v2172
        %2869 = vmatpush.xpose.msra.mxu0 %v2169
        %2870 = vmatpush.xpose.msra.mxu0 %v2166
        %2871 = vmatpush.xpose.msra.mxu0 %v2163
        %2872 = vmatpush.xpose.msra.mxu0 %v2160
        %2873 = vmatpush.xpose.msra.mxu0 %v2157
        %2874 = vmatpush.xpose.msra.mxu0 %v2154
        %2875 = vmatpush.xpose.msra.mxu0 %v2151
        %2876 = vmatpush.xpose.msra.mxu0 %v2148
        %2877 = vmatpush.xpose.msra.mxu0 %v2145
        %2878 = vmatpush.xpose.msra.mxu0 %v2142
        %2879 = vmatpush.xpose.msra.mxu0 %v2139
        %2880 = vmatpush.xpose.msra.mxu0 %v2136
        %2881 = vmatmul.f32.gmra.mxu0 %v2028
        %v2882 = vpop.f32.mrf.mxu0
        %v2883 = vadd.f32 0.0, %v2882
        %2884 = vmatmul.f32.gmra.mxu0 %v2031
        %v2885 = vpop.f32.mrf.mxu0
        %v2886 = vadd.f32 0.0, %v2885
        %2887 = vmatmul.f32.gmra.mxu0 %v2034
        %v2888 = vpop.f32.mrf.mxu0
        %v2889 = vadd.f32 0.0, %v2888
        %2890 = vmatmul.f32.gmra.mxu0 %v2037
        %v2891 = vpop.f32.mrf.mxu0
        %v2892 = vadd.f32 0.0, %v2891
        %2893 = vdwg.mxu0
        %2894 = vmatpush.xpose.msra.mxu0 %v2229
        %2895 = vmatpush.xpose.msra.mxu0 %v2226
        %2896 = vmatpush.xpose.msra.mxu0 %v2223
        %2897 = vmatpush.xpose.msra.mxu0 %v2220
        %2898 = vmatpush.xpose.msra.mxu0 %v2217
        %2899 = vmatpush.xpose.msra.mxu0 %v2214
        %2900 = vmatpush.xpose.msra.mxu0 %v2211
        %2901 = vmatpush.xpose.msra.mxu0 %v2208
        %2902 = vmatpush.xpose.msra.mxu0 %v2205
        %2903 = vmatpush.xpose.msra.mxu0 %v2202
        %2904 = vmatpush.xpose.msra.mxu0 %v2199
        %2905 = vmatpush.xpose.msra.mxu0 %v2196
        %2906 = vmatpush.xpose.msra.mxu0 %v2193
        %2907 = vmatpush.xpose.msra.mxu0 %v2190
        %2908 = vmatpush.xpose.msra.mxu0 %v2187
        %2909 = vmatpush.xpose.msra.mxu0 %v2184
        %2910 = vmatmul.f32.gmra.mxu0 %v2028
        %v2911 = vpop.f32.mrf.mxu0
        %v2912 = vadd.f32 0.0, %v2911
        %2913 = vmatmul.f32.gmra.mxu0 %v2031
        %v2914 = vpop.f32.mrf.mxu0
        %v2915 = vadd.f32 0.0, %v2914
        %2916 = vmatmul.f32.gmra.mxu0 %v2034
        %v2917 = vpop.f32.mrf.mxu0
        %v2918 = vadd.f32 0.0, %v2917
        %2919 = vmatmul.f32.gmra.mxu0 %v2037
        %v2920 = vpop.f32.mrf.mxu0
        %v2921 = vadd.f32 0.0, %v2920
        %2922 = vdwg.mxu0
        %2923 = vmatpush.xpose.msra.mxu0 %v2277
        %2924 = vmatpush.xpose.msra.mxu0 %v2274
        %2925 = vmatpush.xpose.msra.mxu0 %v2271
        %2926 = vmatpush.xpose.msra.mxu0 %v2268
        %2927 = vmatpush.xpose.msra.mxu0 %v2265
        %2928 = vmatpush.xpose.msra.mxu0 %v2262
        %2929 = vmatpush.xpose.msra.mxu0 %v2259
        %2930 = vmatpush.xpose.msra.mxu0 %v2256
        %2931 = vmatpush.xpose.msra.mxu0 %v2253
        %2932 = vmatpush.xpose.msra.mxu0 %v2250
        %2933 = vmatpush.xpose.msra.mxu0 %v2247
        %2934 = vmatpush.xpose.msra.mxu0 %v2244
        %2935 = vmatpush.xpose.msra.mxu0 %v2241
        %2936 = vmatpush.xpose.msra.mxu0 %v2238
        %2937 = vmatpush.xpose.msra.mxu0 %v2235
        %2938 = vmatpush.xpose.msra.mxu0 %v2232
        %2939 = vmatmul.f32.gmra.mxu0 %v2028
        %v2940 = vpop.f32.mrf.mxu0
        %v2941 = vadd.f32 0.0, %v2940
        %2942 = vmatmul.f32.gmra.mxu0 %v2031
        %v2943 = vpop.f32.mrf.mxu0
        %v2944 = vadd.f32 0.0, %v2943
        %2945 = vmatmul.f32.gmra.mxu0 %v2034
        %v2946 = vpop.f32.mrf.mxu0
        %v2947 = vadd.f32 0.0, %v2946
        %2948 = vmatmul.f32.gmra.mxu0 %v2037
        %v2949 = vpop.f32.mrf.mxu0
        %v2950 = vadd.f32 0.0, %v2949
        %2951 = vdwg.mxu0
        %2952 = vmatpush.xpose.msra.mxu0 %v2325
        %2953 = vmatpush.xpose.msra.mxu0 %v2322
        %2954 = vmatpush.xpose.msra.mxu0 %v2319
        %2955 = vmatpush.xpose.msra.mxu0 %v2316
        %2956 = vmatpush.xpose.msra.mxu0 %v2313
        %2957 = vmatpush.xpose.msra.mxu0 %v2310
        %2958 = vmatpush.xpose.msra.mxu0 %v2307
        %2959 = vmatpush.xpose.msra.mxu0 %v2304
        %2960 = vmatpush.xpose.msra.mxu0 %v2301
        %2961 = vmatpush.xpose.msra.mxu0 %v2298
        %2962 = vmatpush.xpose.msra.mxu0 %v2295
        %2963 = vmatpush.xpose.msra.mxu0 %v2292
        %2964 = vmatpush.xpose.msra.mxu0 %v2289
        %2965 = vmatpush.xpose.msra.mxu0 %v2286
        %2966 = vmatpush.xpose.msra.mxu0 %v2283
        %2967 = vmatpush.xpose.msra.mxu0 %v2280
        %2968 = vmatmul.f32.gmra.mxu0 %v2028
        %v2969 = vpop.f32.mrf.mxu0
        %v2970 = vadd.f32 0.0, %v2969
        %2971 = vmatmul.f32.gmra.mxu0 %v2031
        %v2972 = vpop.f32.mrf.mxu0
        %v2973 = vadd.f32 0.0, %v2972
        %2974 = vmatmul.f32.gmra.mxu0 %v2034
        %v2975 = vpop.f32.mrf.mxu0
        %v2976 = vadd.f32 0.0, %v2975
        %2977 = vmatmul.f32.gmra.mxu0 %v2037
        %v2978 = vpop.f32.mrf.mxu0
        %v2979 = vadd.f32 0.0, %v2978
        %2980 = vdwg.mxu0
        %2981 = vmatpush.xpose.msra.mxu0 %v2373
        %2982 = vmatpush.xpose.msra.mxu0 %v2370
        %2983 = vmatpush.xpose.msra.mxu0 %v2367
        %2984 = vmatpush.xpose.msra.mxu0 %v2364
        %2985 = vmatpush.xpose.msra.mxu0 %v2361
        %2986 = vmatpush.xpose.msra.mxu0 %v2358
        %2987 = vmatpush.xpose.msra.mxu0 %v2355
        %2988 = vmatpush.xpose.msra.mxu0 %v2352
        %2989 = vmatpush.xpose.msra.mxu0 %v2349
        %2990 = vmatpush.xpose.msra.mxu0 %v2346
        %2991 = vmatpush.xpose.msra.mxu0 %v2343
        %2992 = vmatpush.xpose.msra.mxu0 %v2340
        %2993 = vmatpush.xpose.msra.mxu0 %v2337
        %2994 = vmatpush.xpose.msra.mxu0 %v2334
        %2995 = vmatpush.xpose.msra.mxu0 %v2331
        %2996 = vmatpush.xpose.msra.mxu0 %v2328
        %2997 = vmatmul.f32.gmra.mxu0 %v2028
        %v2998 = vpop.f32.mrf.mxu0
        %v2999 = vadd.f32 0.0, %v2998
        %3000 = vmatmul.f32.gmra.mxu0 %v2031
        %v3001 = vpop.f32.mrf.mxu0
        %v3002 = vadd.f32 0.0, %v3001
        %3003 = vmatmul.f32.gmra.mxu0 %v2034
        %v3004 = vpop.f32.mrf.mxu0
        %v3005 = vadd.f32 0.0, %v3004
        %3006 = vmatmul.f32.gmra.mxu0 %v2037
        %v3007 = vpop.f32.mrf.mxu0
        %v3008 = vadd.f32 0.0, %v3007
        %3009 = vdwg.mxu0
        %3010 = vmatpush.xpose.msra.mxu0 %v2421
        %3011 = vmatpush.xpose.msra.mxu0 %v2418
        %3012 = vmatpush.xpose.msra.mxu0 %v2415
        %3013 = vmatpush.xpose.msra.mxu0 %v2412
        %3014 = vmatpush.xpose.msra.mxu0 %v2409
        %3015 = vmatpush.xpose.msra.mxu0 %v2406
        %3016 = vmatpush.xpose.msra.mxu0 %v2403
        %3017 = vmatpush.xpose.msra.mxu0 %v2400
        %3018 = vmatpush.xpose.msra.mxu0 %v2397
        %3019 = vmatpush.xpose.msra.mxu0 %v2394
        %3020 = vmatpush.xpose.msra.mxu0 %v2391
        %3021 = vmatpush.xpose.msra.mxu0 %v2388
        %3022 = vmatpush.xpose.msra.mxu0 %v2385
        %3023 = vmatpush.xpose.msra.mxu0 %v2382
        %3024 = vmatpush.xpose.msra.mxu0 %v2379
        %3025 = vmatpush.xpose.msra.mxu0 %v2376
        %3026 = vmatmul.f32.gmra.mxu0 %v2028
        %v3027 = vpop.f32.mrf.mxu0
        %v3028 = vadd.f32 0.0, %v3027
        %3029 = vmatmul.f32.gmra.mxu0 %v2031
        %v3030 = vpop.f32.mrf.mxu0
        %v3031 = vadd.f32 0.0, %v3030
        %3032 = vmatmul.f32.gmra.mxu0 %v2034
        %v3033 = vpop.f32.mrf.mxu0
        %v3034 = vadd.f32 0.0, %v3033
        %3035 = vmatmul.f32.gmra.mxu0 %v2037
        %v3036 = vpop.f32.mrf.mxu0
        %v3037 = vadd.f32 0.0, %v3036
        %3038 = vdwg.mxu0
        %3039 = vmatpush.xpose.msra.mxu0 %v2469
        %3040 = vmatpush.xpose.msra.mxu0 %v2466
        %3041 = vmatpush.xpose.msra.mxu0 %v2463
        %3042 = vmatpush.xpose.msra.mxu0 %v2460
        %3043 = vmatpush.xpose.msra.mxu0 %v2457
        %3044 = vmatpush.xpose.msra.mxu0 %v2454
        %3045 = vmatpush.xpose.msra.mxu0 %v2451
        %3046 = vmatpush.xpose.msra.mxu0 %v2448
        %3047 = vmatpush.xpose.msra.mxu0 %v2445
        %3048 = vmatpush.xpose.msra.mxu0 %v2442
        %3049 = vmatpush.xpose.msra.mxu0 %v2439
        %3050 = vmatpush.xpose.msra.mxu0 %v2436
        %3051 = vmatpush.xpose.msra.mxu0 %v2433
        %3052 = vmatpush.xpose.msra.mxu0 %v2430
        %3053 = vmatpush.xpose.msra.mxu0 %v2427
        %3054 = vmatpush.xpose.msra.mxu0 %v2424
        %3055 = vmatmul.f32.gmra.mxu0 %v2028
        %v3056 = vpop.f32.mrf.mxu0
        %v3057 = vadd.f32 0.0, %v3056
        %3058 = vmatmul.f32.gmra.mxu0 %v2031
        %v3059 = vpop.f32.mrf.mxu0
        %v3060 = vadd.f32 0.0, %v3059
        %3061 = vmatmul.f32.gmra.mxu0 %v2034
        %v3062 = vpop.f32.mrf.mxu0
        %v3063 = vadd.f32 0.0, %v3062
        %3064 = vmatmul.f32.gmra.mxu0 %v2037
        %v3065 = vpop.f32.mrf.mxu0
        %v3066 = vadd.f32 0.0, %v3065
        %3067 = vdwg.mxu0
        %3068 = vmatpush.xpose.msra.mxu0 %v2517
        %3069 = vmatpush.xpose.msra.mxu0 %v2514
        %3070 = vmatpush.xpose.msra.mxu0 %v2511
        %3071 = vmatpush.xpose.msra.mxu0 %v2508
        %3072 = vmatpush.xpose.msra.mxu0 %v2505
        %3073 = vmatpush.xpose.msra.mxu0 %v2502
        %3074 = vmatpush.xpose.msra.mxu0 %v2499
        %3075 = vmatpush.xpose.msra.mxu0 %v2496
        %3076 = vmatpush.xpose.msra.mxu0 %v2493
        %3077 = vmatpush.xpose.msra.mxu0 %v2490
        %3078 = vmatpush.xpose.msra.mxu0 %v2487
        %3079 = vmatpush.xpose.msra.mxu0 %v2484
        %3080 = vmatpush.xpose.msra.mxu0 %v2481
        %3081 = vmatpush.xpose.msra.mxu0 %v2478
        %3082 = vmatpush.xpose.msra.mxu0 %v2475
        %3083 = vmatpush.xpose.msra.mxu0 %v2472
        %3084 = vmatmul.f32.gmra.mxu0 %v2028
        %v3085 = vpop.f32.mrf.mxu0
        %v3086 = vadd.f32 0.0, %v3085
        %3087 = vmatmul.f32.gmra.mxu0 %v2031
        %v3088 = vpop.f32.mrf.mxu0
        %v3089 = vadd.f32 0.0, %v3088
        %3090 = vmatmul.f32.gmra.mxu0 %v2034
        %v3091 = vpop.f32.mrf.mxu0
        %v3092 = vadd.f32 0.0, %v3091
        %3093 = vmatmul.f32.gmra.mxu0 %v2037
        %v3094 = vpop.f32.mrf.mxu0
        %v3095 = vadd.f32 0.0, %v3094
        %3096 = vdwg.mxu0
        %3097 = vmatpush.xpose.msra.mxu0 %v2565
        %3098 = vmatpush.xpose.msra.mxu0 %v2562
        %3099 = vmatpush.xpose.msra.mxu0 %v2559
        %3100 = vmatpush.xpose.msra.mxu0 %v2556
        %3101 = vmatpush.xpose.msra.mxu0 %v2553
        %3102 = vmatpush.xpose.msra.mxu0 %v2550
        %3103 = vmatpush.xpose.msra.mxu0 %v2547
        %3104 = vmatpush.xpose.msra.mxu0 %v2544
        %3105 = vmatpush.xpose.msra.mxu0 %v2541
        %3106 = vmatpush.xpose.msra.mxu0 %v2538
        %3107 = vmatpush.xpose.msra.mxu0 %v2535
        %3108 = vmatpush.xpose.msra.mxu0 %v2532
        %3109 = vmatpush.xpose.msra.mxu0 %v2529
        %3110 = vmatpush.xpose.msra.mxu0 %v2526
        %3111 = vmatpush.xpose.msra.mxu0 %v2523
        %3112 = vmatpush.xpose.msra.mxu0 %v2520
        %3113 = vmatmul.f32.gmra.mxu0 %v2028
        %v3114 = vpop.f32.mrf.mxu0
        %v3115 = vadd.f32 0.0, %v3114
        %3116 = vmatmul.f32.gmra.mxu0 %v2031
        %v3117 = vpop.f32.mrf.mxu0
        %v3118 = vadd.f32 0.0, %v3117
        %3119 = vmatmul.f32.gmra.mxu0 %v2034
        %v3120 = vpop.f32.mrf.mxu0
        %v3121 = vadd.f32 0.0, %v3120
        %3122 = vmatmul.f32.gmra.mxu0 %v2037
        %v3123 = vpop.f32.mrf.mxu0
        %v3124 = vadd.f32 0.0, %v3123
        %3125 = vdwg.mxu0
        %3126 = vmatpush.xpose.msra.mxu0 %v2613
        %3127 = vmatpush.xpose.msra.mxu0 %v2610
        %3128 = vmatpush.xpose.msra.mxu0 %v2607
        %3129 = vmatpush.xpose.msra.mxu0 %v2604
        %3130 = vmatpush.xpose.msra.mxu0 %v2601
        %3131 = vmatpush.xpose.msra.mxu0 %v2598
        %3132 = vmatpush.xpose.msra.mxu0 %v2595
        %3133 = vmatpush.xpose.msra.mxu0 %v2592
        %3134 = vmatpush.xpose.msra.mxu0 %v2589
        %3135 = vmatpush.xpose.msra.mxu0 %v2586
        %3136 = vmatpush.xpose.msra.mxu0 %v2583
        %3137 = vmatpush.xpose.msra.mxu0 %v2580
        %3138 = vmatpush.xpose.msra.mxu0 %v2577
        %3139 = vmatpush.xpose.msra.mxu0 %v2574
        %3140 = vmatpush.xpose.msra.mxu0 %v2571
        %3141 = vmatpush.xpose.msra.mxu0 %v2568
        %3142 = vmatmul.f32.gmra.mxu0 %v2028
        %v3143 = vpop.f32.mrf.mxu0
        %v3144 = vadd.f32 0.0, %v3143
        %3145 = vmatmul.f32.gmra.mxu0 %v2031
        %v3146 = vpop.f32.mrf.mxu0
        %v3147 = vadd.f32 0.0, %v3146
        %3148 = vmatmul.f32.gmra.mxu0 %v2034
        %v3149 = vpop.f32.mrf.mxu0
        %v3150 = vadd.f32 0.0, %v3149
        %3151 = vmatmul.f32.gmra.mxu0 %v2037
        %v3152 = vpop.f32.mrf.mxu0
        %v3153 = vadd.f32 0.0, %v3152
        %3154 = vdwg.mxu0
        %3155 = vmatpush.xpose.msra.mxu0 %v2661
        %3156 = vmatpush.xpose.msra.mxu0 %v2658
        %3157 = vmatpush.xpose.msra.mxu0 %v2655
        %3158 = vmatpush.xpose.msra.mxu0 %v2652
        %3159 = vmatpush.xpose.msra.mxu0 %v2649
        %3160 = vmatpush.xpose.msra.mxu0 %v2646
        %3161 = vmatpush.xpose.msra.mxu0 %v2643
        %3162 = vmatpush.xpose.msra.mxu0 %v2640
        %3163 = vmatpush.xpose.msra.mxu0 %v2637
        %3164 = vmatpush.xpose.msra.mxu0 %v2634
        %3165 = vmatpush.xpose.msra.mxu0 %v2631
        %3166 = vmatpush.xpose.msra.mxu0 %v2628
        %3167 = vmatpush.xpose.msra.mxu0 %v2625
        %3168 = vmatpush.xpose.msra.mxu0 %v2622
        %3169 = vmatpush.xpose.msra.mxu0 %v2619
        %3170 = vmatpush.xpose.msra.mxu0 %v2616
        %3171 = vmatmul.f32.gmra.mxu0 %v2028
        %v3172 = vpop.f32.mrf.mxu0
        %v3173 = vadd.f32 0.0, %v3172
        %3174 = vmatmul.f32.gmra.mxu0 %v2031
        %v3175 = vpop.f32.mrf.mxu0
        %v3176 = vadd.f32 0.0, %v3175
        %3177 = vmatmul.f32.gmra.mxu0 %v2034
        %v3178 = vpop.f32.mrf.mxu0
        %v3179 = vadd.f32 0.0, %v3178
        %3180 = vmatmul.f32.gmra.mxu0 %v2037
        %v3181 = vpop.f32.mrf.mxu0
        %v3182 = vadd.f32 0.0, %v3181
        %3183 = vdwg.mxu0
        %3184 = vmatpush.xpose.msra.mxu0 %v2709
        %3185 = vmatpush.xpose.msra.mxu0 %v2706
        %3186 = vmatpush.xpose.msra.mxu0 %v2703
        %3187 = vmatpush.xpose.msra.mxu0 %v2700
        %3188 = vmatpush.xpose.msra.mxu0 %v2697
        %3189 = vmatpush.xpose.msra.mxu0 %v2694
        %3190 = vmatpush.xpose.msra.mxu0 %v2691
        %3191 = vmatpush.xpose.msra.mxu0 %v2688
        %3192 = vmatpush.xpose.msra.mxu0 %v2685
        %3193 = vmatpush.xpose.msra.mxu0 %v2682
        %3194 = vmatpush.xpose.msra.mxu0 %v2679
        %3195 = vmatpush.xpose.msra.mxu0 %v2676
        %3196 = vmatpush.xpose.msra.mxu0 %v2673
        %3197 = vmatpush.xpose.msra.mxu0 %v2670
        %3198 = vmatpush.xpose.msra.mxu0 %v2667
        %3199 = vmatpush.xpose.msra.mxu0 %v2664
        %3200 = vmatmul.f32.gmra.mxu0 %v2028
        %v3201 = vpop.f32.mrf.mxu0
        %v3202 = vadd.f32 0.0, %v3201
        %3203 = vmatmul.f32.gmra.mxu0 %v2031
        %v3204 = vpop.f32.mrf.mxu0
        %v3205 = vadd.f32 0.0, %v3204
        %3206 = vmatmul.f32.gmra.mxu0 %v2034
        %v3207 = vpop.f32.mrf.mxu0
        %v3208 = vadd.f32 0.0, %v3207
        %3209 = vmatmul.f32.gmra.mxu0 %v2037
        %v3210 = vpop.f32.mrf.mxu0
        %v3211 = vadd.f32 0.0, %v3210
        %3212 = vdwg.mxu0
        %3213 = vmatpush.xpose.msra.mxu0 %v2757
        %3214 = vmatpush.xpose.msra.mxu0 %v2754
        %3215 = vmatpush.xpose.msra.mxu0 %v2751
        %3216 = vmatpush.xpose.msra.mxu0 %v2748
        %3217 = vmatpush.xpose.msra.mxu0 %v2745
        %3218 = vmatpush.xpose.msra.mxu0 %v2742
        %3219 = vmatpush.xpose.msra.mxu0 %v2739
        %3220 = vmatpush.xpose.msra.mxu0 %v2736
        %3221 = vmatpush.xpose.msra.mxu0 %v2733
        %3222 = vmatpush.xpose.msra.mxu0 %v2730
        %3223 = vmatpush.xpose.msra.mxu0 %v2727
        %3224 = vmatpush.xpose.msra.mxu0 %v2724
        %3225 = vmatpush.xpose.msra.mxu0 %v2721
        %3226 = vmatpush.xpose.msra.mxu0 %v2718
        %3227 = vmatpush.xpose.msra.mxu0 %v2715
        %3228 = vmatpush.xpose.msra.mxu0 %v2712
        %3229 = vmatmul.f32.gmra.mxu0 %v2028
        %v3230 = vpop.f32.mrf.mxu0
        %v3231 = vadd.f32 0.0, %v3230
        %3232 = vmatmul.f32.gmra.mxu0 %v2031
        %v3233 = vpop.f32.mrf.mxu0
        %v3234 = vadd.f32 0.0, %v3233
        %3235 = vmatmul.f32.gmra.mxu0 %v2034
        %v3236 = vpop.f32.mrf.mxu0
        %v3237 = vadd.f32 0.0, %v3236
        %3238 = vmatmul.f32.gmra.mxu0 %v2037
        %v3239 = vpop.f32.mrf.mxu0
        %v3240 = vadd.f32 0.0, %v3239
        %3241 = vdwg.mxu0
        %3242 = vmatpush.xpose.msra.mxu0 %v2805
        %3243 = vmatpush.xpose.msra.mxu0 %v2802
        %3244 = vmatpush.xpose.msra.mxu0 %v2799
        %3245 = vmatpush.xpose.msra.mxu0 %v2796
        %3246 = vmatpush.xpose.msra.mxu0 %v2793
        %3247 = vmatpush.xpose.msra.mxu0 %v2790
        %3248 = vmatpush.xpose.msra.mxu0 %v2787
        %3249 = vmatpush.xpose.msra.mxu0 %v2784
        %3250 = vmatpush.xpose.msra.mxu0 %v2781
        %3251 = vmatpush.xpose.msra.mxu0 %v2778
        %3252 = vmatpush.xpose.msra.mxu0 %v2775
        %3253 = vmatpush.xpose.msra.mxu0 %v2772
        %3254 = vmatpush.xpose.msra.mxu0 %v2769
        %3255 = vmatpush.xpose.msra.mxu0 %v2766
        %3256 = vmatpush.xpose.msra.mxu0 %v2763
        %3257 = vmatpush.xpose.msra.mxu0 %v2760
        %3258 = vmatmul.f32.gmra.mxu0 %v2028
        %v3259 = vpop.f32.mrf.mxu0
        %v3260 = vadd.f32 0.0, %v3259
        %3261 = vmatmul.f32.gmra.mxu0 %v2031
        %v3262 = vpop.f32.mrf.mxu0
        %v3263 = vadd.f32 0.0, %v3262
        %3264 = vmatmul.f32.gmra.mxu0 %v2034
        %v3265 = vpop.f32.mrf.mxu0
        %v3266 = vadd.f32 0.0, %v3265
        %3267 = vmatmul.f32.gmra.mxu0 %v2037
        %v3268 = vpop.f32.mrf.mxu0
        %v3269 = vadd.f32 0.0, %v3268
        %3270 = vdwg.mxu0
        %v3287 = vrot.slane %v1573, 7
        %v3288 = vrot.slane %v1605, 6
        %v3289 = vrot.slane %v1637, 5
        %v3290 = vrot.slane %v1669, 4
        %v3291 = vrot.slane %v1701, 3
        %v3292 = vrot.slane %v1733, 2
        %v3293 = vrot.slane %v1765, 1
        %v3294 = vrot.slane %v1829, 7
        %v3295 = vrot.slane %v1861, 6
        %v3296 = vrot.slane %v1893, 5
        %v3297 = vrot.slane %v1925, 4
        %v3298 = vrot.slane %v1957, 3
        %v3299 = vrot.slane %v1989, 2
        %v3300 = vrot.slane %v2021, 1
        %vm3301 = vcmask 1040384
        %v3302 = vsel %vm3301, %v1541, %v3287
        %vm3303 = vcmask 1042434
        %v3304 = vsel %vm3303, %v3288, %v3289
        %vm3305 = vcmask 1041408
        %v3306 = vsel %vm3305, %v3302, %v3304
        %vm3307 = vcmask 1044484
        %v3308 = vsel %vm3307, %v3290, %v3291
        %vm3309 = vcmask 1046534
        %v3310 = vsel %vm3309, %v3292, %v3293
        %vm3311 = vcmask 1045508
        %v3312 = vsel %vm3311, %v3308, %v3310
        %vm3313 = vcmask 1043456
        %v3314 = vsel %vm3313, %v3306, %v3312
        %v3315 = vsel %vm3301, %v1797, %v3294
        %v3316 = vsel %vm3303, %v3295, %v3296
        %v3317 = vsel %vm3305, %v3315, %v3316
        %v3318 = vsel %vm3307, %v3297, %v3298
        %v3319 = vsel %vm3309, %v3299, %v3300
        %v3320 = vsel %vm3311, %v3318, %v3319
        %v3321 = vsel %vm3313, %v3317, %v3320
        %3324 = vst [vmem:[%s195] sm:$0xff] %v3314
        %3325 = vst [vmem:[%s195 + $0x8] sm:$0xff] %v3321
        %v3326 = vmul.f32 %v2825, 0.5
        %v3327 = vmul.f32 %v2854, 0.5
        %v3328 = vmul.f32 %v2883, 0.5
        %v3329 = vmul.f32 %v2912, 0.5
        %v3330 = vmul.f32 %v2941, 0.5
        %v3331 = vmul.f32 %v2970, 0.5
        %v3332 = vmul.f32 %v2999, 0.5
        %v3333 = vmul.f32 %v3028, 0.5
        %v3334 = vmul.f32 %v3057, 0.5
        %v3335 = vmul.f32 %v3086, 0.5
        %v3336 = vmul.f32 %v3115, 0.5
        %v3337 = vmul.f32 %v3144, 0.5
        %v3338 = vmul.f32 %v3173, 0.5
        %v3339 = vmul.f32 %v3202, 0.5
        %v3340 = vmul.f32 %v3231, 0.5
        %v3341 = vmul.f32 %v3260, 0.5
        %v3342 = vmul.f32 %v2828, 0.5
        %v3343 = vmul.f32 %v2857, 0.5
        %v3344 = vmul.f32 %v2886, 0.5
        %v3345 = vmul.f32 %v2915, 0.5
        %v3346 = vmul.f32 %v2944, 0.5
        %v3347 = vmul.f32 %v2973, 0.5
        %v3348 = vmul.f32 %v3002, 0.5
        %v3349 = vmul.f32 %v3031, 0.5
        %v3350 = vmul.f32 %v3060, 0.5
        %v3351 = vmul.f32 %v3089, 0.5
        %v3352 = vmul.f32 %v3118, 0.5
        %v3353 = vmul.f32 %v3147, 0.5
        %v3354 = vmul.f32 %v3176, 0.5
        %v3355 = vmul.f32 %v3205, 0.5
        %v3356 = vmul.f32 %v3234, 0.5
        %v3357 = vmul.f32 %v3263, 0.5
        %v3358 = vmul.f32 %v2831, 0.5
        %v3359 = vmul.f32 %v2860, 0.5
        %v3360 = vmul.f32 %v2889, 0.5
        %v3361 = vmul.f32 %v2918, 0.5
        %v3362 = vmul.f32 %v2947, 0.5
        %v3363 = vmul.f32 %v2976, 0.5
        %v3364 = vmul.f32 %v3005, 0.5
        %v3365 = vmul.f32 %v3034, 0.5
        %v3366 = vmul.f32 %v3063, 0.5
        %v3367 = vmul.f32 %v3092, 0.5
        %v3368 = vmul.f32 %v3121, 0.5
        %v3369 = vmul.f32 %v3150, 0.5
        %v3370 = vmul.f32 %v3179, 0.5
        %v3371 = vmul.f32 %v3208, 0.5
        %v3372 = vmul.f32 %v3237, 0.5
        %v3373 = vmul.f32 %v3266, 0.5
        %v3374 = vmul.f32 %v2834, 0.5
        %v3375 = vmul.f32 %v2863, 0.5
        %v3376 = vmul.f32 %v2892, 0.5
        %v3377 = vmul.f32 %v2921, 0.5
        %v3378 = vmul.f32 %v2950, 0.5
        %v3379 = vmul.f32 %v2979, 0.5
        %v3380 = vmul.f32 %v3008, 0.5
        %v3381 = vmul.f32 %v3037, 0.5
        %v3382 = vmul.f32 %v3066, 0.5
        %v3383 = vmul.f32 %v3095, 0.5
        %v3384 = vmul.f32 %v3124, 0.5
        %v3385 = vmul.f32 %v3153, 0.5
        %v3386 = vmul.f32 %v3182, 0.5
        %v3387 = vmul.f32 %v3211, 0.5
        %v3388 = vmul.f32 %v3240, 0.5
        %v3389 = vmul.f32 %v3269, 0.5
        %v3390 = vmul.f32 %v1529, %v1529
        %v3391 = vmul.f32 %v1561, %v1561
        %v3392 = vmul.f32 %v1593, %v1593
        %v3393 = vmul.f32 %v1625, %v1625
        %v3394 = vmul.f32 %v1657, %v1657
        %v3395 = vmul.f32 %v1689, %v1689
        %v3396 = vmul.f32 %v1721, %v1721
        %v3397 = vmul.f32 %v1753, %v1753
        %v3398 = vmul.f32 %v1785, %v1785
        %v3399 = vmul.f32 %v1817, %v1817
        %v3400 = vmul.f32 %v1849, %v1849
        %v3401 = vmul.f32 %v1881, %v1881
        %v3402 = vmul.f32 %v1913, %v1913
        %v3403 = vmul.f32 %v1945, %v1945
        %v3404 = vmul.f32 %v1977, %v1977
        %v3405 = vmul.f32 %v2009, %v2009
        %v3406 = vmul.f32 %v1532, %v1532
        %v3407 = vmul.f32 %v1564, %v1564
        %v3408 = vmul.f32 %v1596, %v1596
        %v3409 = vmul.f32 %v1628, %v1628
        %v3410 = vmul.f32 %v1660, %v1660
        %v3411 = vmul.f32 %v1692, %v1692
        %v3412 = vmul.f32 %v1724, %v1724
        %v3413 = vmul.f32 %v1756, %v1756
        %v3414 = vmul.f32 %v1788, %v1788
        %v3415 = vmul.f32 %v1820, %v1820
        %v3416 = vmul.f32 %v1852, %v1852
        %v3417 = vmul.f32 %v1884, %v1884
        %v3418 = vmul.f32 %v1916, %v1916
        %v3419 = vmul.f32 %v1948, %v1948
        %v3420 = vmul.f32 %v1980, %v1980
        %v3421 = vmul.f32 %v2012, %v2012
        %v3422 = vmul.f32 %v1535, %v1535
        %v3423 = vmul.f32 %v1567, %v1567
        %v3424 = vmul.f32 %v1599, %v1599
        %v3425 = vmul.f32 %v1631, %v1631
        %v3426 = vmul.f32 %v1663, %v1663
        %v3427 = vmul.f32 %v1695, %v1695
        %v3428 = vmul.f32 %v1727, %v1727
        %v3429 = vmul.f32 %v1759, %v1759
        %v3430 = vmul.f32 %v1791, %v1791
        %v3431 = vmul.f32 %v1823, %v1823
        %v3432 = vmul.f32 %v1855, %v1855
        %v3433 = vmul.f32 %v1887, %v1887
        %v3434 = vmul.f32 %v1919, %v1919
        %v3435 = vmul.f32 %v1951, %v1951
        %v3436 = vmul.f32 %v1983, %v1983
        %v3437 = vmul.f32 %v2015, %v2015
        %v3438 = vmul.f32 %v1538, %v1538
        %v3439 = vmul.f32 %v1570, %v1570
        %v3440 = vmul.f32 %v1602, %v1602
        %v3441 = vmul.f32 %v1634, %v1634
        %v3442 = vmul.f32 %v1666, %v1666
        %v3443 = vmul.f32 %v1698, %v1698
        %v3444 = vmul.f32 %v1730, %v1730
        %v3445 = vmul.f32 %v1762, %v1762
        %v3446 = vmul.f32 %v1794, %v1794
        %v3447 = vmul.f32 %v1826, %v1826
        %v3448 = vmul.f32 %v1858, %v1858
        %v3449 = vmul.f32 %v1890, %v1890
        %v3450 = vmul.f32 %v1922, %v1922
        %v3451 = vmul.f32 %v1954, %v1954
        %v3452 = vmul.f32 %v1986, %v1986
        %v3453 = vmul.f32 %v2018, %v2018
        %v3454 = vsub.f32 %v3326, %v3390
        %v3455 = vsub.f32 %v3327, %v3391
        %v3456 = vsub.f32 %v3328, %v3392
        %v3457 = vsub.f32 %v3329, %v3393
        %v3458 = vsub.f32 %v3330, %v3394
        %v3459 = vsub.f32 %v3331, %v3395
        %v3460 = vsub.f32 %v3332, %v3396
        %v3461 = vsub.f32 %v3333, %v3397
        %v3462 = vsub.f32 %v3334, %v3398
        %v3463 = vsub.f32 %v3335, %v3399
        %v3464 = vsub.f32 %v3336, %v3400
        %v3465 = vsub.f32 %v3337, %v3401
        %v3466 = vsub.f32 %v3338, %v3402
        %v3467 = vsub.f32 %v3339, %v3403
        %v3468 = vsub.f32 %v3340, %v3404
        %v3469 = vsub.f32 %v3341, %v3405
        %v3470 = vsub.f32 %v3342, %v3406
        %v3471 = vsub.f32 %v3343, %v3407
        %v3472 = vsub.f32 %v3344, %v3408
        %v3473 = vsub.f32 %v3345, %v3409
        %v3474 = vsub.f32 %v3346, %v3410
        %v3475 = vsub.f32 %v3347, %v3411
        %v3476 = vsub.f32 %v3348, %v3412
        %v3477 = vsub.f32 %v3349, %v3413
        %v3478 = vsub.f32 %v3350, %v3414
        %v3479 = vsub.f32 %v3351, %v3415
        %v3480 = vsub.f32 %v3352, %v3416
        %v3481 = vsub.f32 %v3353, %v3417
        %v3482 = vsub.f32 %v3354, %v3418
        %v3483 = vsub.f32 %v3355, %v3419
        %v3484 = vsub.f32 %v3356, %v3420
        %v3485 = vsub.f32 %v3357, %v3421
        %v3486 = vsub.f32 %v3358, %v3422
        %v3487 = vsub.f32 %v3359, %v3423
        %v3488 = vsub.f32 %v3360, %v3424
        %v3489 = vsub.f32 %v3361, %v3425
        %v3490 = vsub.f32 %v3362, %v3426
        %v3491 = vsub.f32 %v3363, %v3427
        %v3492 = vsub.f32 %v3364, %v3428
        %v3493 = vsub.f32 %v3365, %v3429
        %v3494 = vsub.f32 %v3366, %v3430
        %v3495 = vsub.f32 %v3367, %v3431
        %v3496 = vsub.f32 %v3368, %v3432
        %v3497 = vsub.f32 %v3369, %v3433
        %v3498 = vsub.f32 %v3370, %v3434
        %v3499 = vsub.f32 %v3371, %v3435
        %v3500 = vsub.f32 %v3372, %v3436
        %v3501 = vsub.f32 %v3373, %v3437
        %v3502 = vsub.f32 %v3374, %v3438
        %v3503 = vsub.f32 %v3375, %v3439
        %v3504 = vsub.f32 %v3376, %v3440
        %v3505 = vsub.f32 %v3377, %v3441
        %v3506 = vsub.f32 %v3378, %v3442
        %v3507 = vsub.f32 %v3379, %v3443
        %v3508 = vsub.f32 %v3380, %v3444
        %v3509 = vsub.f32 %v3381, %v3445
        %v3510 = vsub.f32 %v3382, %v3446
        %v3511 = vsub.f32 %v3383, %v3447
        %v3512 = vsub.f32 %v3384, %v3448
        %v3513 = vsub.f32 %v3385, %v3449
        %v3514 = vsub.f32 %v3386, %v3450
        %v3515 = vsub.f32 %v3387, %v3451
        %v3516 = vsub.f32 %v3388, %v3452
        %v3517 = vsub.f32 %v3389, %v3453
        %v3518 = vadd.f32 %v3454, %v3455
        %v3519 = vadd.f32 %v3518, %v3456
        %v3520 = vadd.f32 %v3519, %v3457
        %v3521 = vadd.f32 %v3520, %v3458
        %v3522 = vadd.f32 %v3521, %v3459
        %v3523 = vadd.f32 %v3522, %v3460
        %v3524 = vadd.f32 %v3523, %v3461
        %v3525 = vadd.f32 %v3524, %v3462
        %v3526 = vadd.f32 %v3525, %v3463
        %v3527 = vadd.f32 %v3526, %v3464
        %v3528 = vadd.f32 %v3527, %v3465
        %v3529 = vadd.f32 %v3528, %v3466
        %v3530 = vadd.f32 %v3529, %v3467
        %v3531 = vadd.f32 %v3530, %v3468
        %v3532 = vadd.f32 %v3531, %v3469
        %v3533 = vadd.f32 %v3532, %v3470
        %v3534 = vadd.f32 %v3533, %v3471
        %v3535 = vadd.f32 %v3534, %v3472
        %v3536 = vadd.f32 %v3535, %v3473
        %v3537 = vadd.f32 %v3536, %v3474
        %v3538 = vadd.f32 %v3537, %v3475
        %v3539 = vadd.f32 %v3538, %v3476
        %v3540 = vadd.f32 %v3539, %v3477
        %v3541 = vadd.f32 %v3540, %v3478
        %v3542 = vadd.f32 %v3541, %v3479
        %v3543 = vadd.f32 %v3542, %v3480
        %v3544 = vadd.f32 %v3543, %v3481
        %v3545 = vadd.f32 %v3544, %v3482
        %v3546 = vadd.f32 %v3545, %v3483
        %v3547 = vadd.f32 %v3546, %v3484
        %v3548 = vadd.f32 %v3547, %v3485
        %v3549 = vadd.f32 %v3548, %v3486
        %v3550 = vadd.f32 %v3549, %v3487
        %v3551 = vadd.f32 %v3550, %v3488
        %v3552 = vadd.f32 %v3551, %v3489
        %v3553 = vadd.f32 %v3552, %v3490
        %v3554 = vadd.f32 %v3553, %v3491
        %v3555 = vadd.f32 %v3554, %v3492
        %v3556 = vadd.f32 %v3555, %v3493
        %v3557 = vadd.f32 %v3556, %v3494
        %v3558 = vadd.f32 %v3557, %v3495
        %v3559 = vadd.f32 %v3558, %v3496
        %v3560 = vadd.f32 %v3559, %v3497
        %v3561 = vadd.f32 %v3560, %v3498
        %v3562 = vadd.f32 %v3561, %v3499
        %v3563 = vadd.f32 %v3562, %v3500
        %v3564 = vadd.f32 %v3563, %v3501
        %v3565 = vadd.f32 %v3564, %v3502
        %v3566 = vadd.f32 %v3565, %v3503
        %v3567 = vadd.f32 %v3566, %v3504
        %v3568 = vadd.f32 %v3567, %v3505
        %v3569 = vadd.f32 %v3568, %v3506
        %v3570 = vadd.f32 %v3569, %v3507
        %v3571 = vadd.f32 %v3570, %v3508
        %v3572 = vadd.f32 %v3571, %v3509
        %v3573 = vadd.f32 %v3572, %v3510
        %v3574 = vadd.f32 %v3573, %v3511
        %v3575 = vadd.f32 %v3574, %v3512
        %v3576 = vadd.f32 %v3575, %v3513
        %v3577 = vadd.f32 %v3576, %v3514
        %v3578 = vadd.f32 %v3577, %v3515
        %v3579 = vadd.f32 %v3578, %v3516
        %v3580 = vadd.f32 %v3579, %v3517
        %3581 = vadd.xlane.f32.xlu0 %v3580
        %v3582 = vpop.xlane.xlu0 %3581
        %v3583 = vrot.slane %v3582, 4
        %v3584 = vadd.f32 %v3582, %v3583
        %v3585 = vrot.slane %v3584, 2
        %v3586 = vadd.f32 %v3584, %v3585
        %v3587 = vrot.slane %v3586, 1
        %v3588 = vadd.f32 %v3586, %v3587
        %s3589 = vtos %v3588
        %v3590 = vstv %s3589
        %3591 = vst [vmem:[%s202] sm:$0xff] %v3590
        %s3592 = sand.u32 %s98, 1
        %s3593 = scalar_lea.sflag [#allocation3], %s3592
        %s3594 = sand.u32 %s98, 1
        %s3595 = smul.addr %s3594, 16
        %s3596 = scalar_lea.vmem [#allocation2], %s3595
        %s3597 = sand.u32 %s124, 1
        %s3598 = scalar_lea.sflag [#allocation5], %s3597
        %s3599 = sand.u32 %s124, 1
        %s3600 = smul.addr %s3599, 8
        %s3601 = scalar_lea.vmem [#allocation4], %s3600
        // Predicated region
        $region33: #{tpu_custom_call.1} parent=31 // pred_check
          %p3602 = pneg %p108
        $region34: #{tpu_custom_call.1} parent=31 // pred_check_branch
          %3604 = sbr.rel (%p3602) target = $region36
        $region35: #{tpu_custom_call.1} parent=31 // pred_region
          %s3605 = smul.u32 16, %s22
          %3607 = vsyncadd %s3593, 0
          %s3608 = scalar_lea.hbm %s3, %s3605
          %s3610 = sshll.u32 %s3596, 4
          %s3611 = int_to_ptr.vmem [resolvable:$true] %s3610
          %s3612 = sshll.u32 %s3608, 4
          %s3613 = int_to_ptr.hbm [resolvable:$true] %s3612
          %3615 = dma.vmem_to_hbm [thread:$0]  %s3611, 256, %s3613, %s3593
        $region36: #{tpu_custom_call.1} parent=31 // pred_fallthru
          _
        // Predicated region
        $region37: #{tpu_custom_call.1} parent=31 // pred_check
          %p3616 = pneg %p134
        $region38: #{tpu_custom_call.1} parent=31 // pred_check_branch
          %3618 = sbr.rel (%p3616) target = $region40
        $region39: #{tpu_custom_call.1} parent=31 // pred_region
          %3620 = vsyncadd %s3598, 0
          %s3621 = smul.addr %s22, 8
          %s3622 = scalar_lea.hbm %s4, %s3621
          %s3624 = sshll.u32 %s3601, 4
          %s3625 = int_to_ptr.vmem [resolvable:$true] %s3624
          %s3626 = sshll.u32 %s3622, 4
          %s3627 = int_to_ptr.hbm [resolvable:$true] %s3626
          %3629 = dma.vmem_to_hbm [thread:$0]  %s3625, 128, %s3627, %s3598
        $region40: #{tpu_custom_call.1} parent=31 // pred_fallthru
          _
      $region32: #{tpu_custom_call.1} parent=5 // pred_fallthru
        _
      %p3630 = scmp.le.s32.totalorder 2, %s17
      // Predicated region
      $region41: #{tpu_custom_call.1} parent=5 // pred_check
        %p3631 = pneg %p3630
      $region42: #{tpu_custom_call.1} parent=5 // pred_check_branch
        %3633 = sbr.rel (%p3631) target = $region44
      $region43: #{tpu_custom_call.1} parent=5 // pred_region
        %s3634 = ssub.s32 %s17, 2
        // Predicated region
        $region45: #{tpu_custom_call.1} parent=43 // pred_check
          %p3635 = pneg %p114
        $region46: #{tpu_custom_call.1} parent=43 // pred_check_branch
          %3637 = sbr.rel (%p3635) target = $region48
        $region47: #{tpu_custom_call.1} parent=43 // pred_region
          %s3638 = sand.u32 %s99, 1
          %s3639 = scalar_lea.sflag [#allocation3], %s3638
          %s3640 = sand.u32 %s99, 1
          %s3641 = smul.addr %s3640, 16
          %s3642 = scalar_lea.vmem [#allocation2], %s3641
          %3644 = dma.done %s3639, 256
        $region48: #{tpu_custom_call.1} parent=43 // pred_fallthru
          _
        // Predicated region
        $region49: #{tpu_custom_call.1} parent=43 // pred_check
          %p3645 = pneg %p140
        $region50: #{tpu_custom_call.1} parent=43 // pred_check_branch
          %3647 = sbr.rel (%p3645) target = $region52
        $region51: #{tpu_custom_call.1} parent=43 // pred_region
          %s3648 = sand.u32 %s125, 1
          %s3649 = scalar_lea.sflag [#allocation5], %s3648
          %s3650 = sand.u32 %s125, 1
          %s3651 = smul.addr %s3650, 8
          %s3652 = scalar_lea.vmem [#allocation4], %s3651
          %3654 = dma.done %s3649, 128
        $region52: #{tpu_custom_call.1} parent=43 // pred_fallthru
          _
      $region44: #{tpu_custom_call.1} parent=5 // pred_fallthru
        _
    $region6: #{tpu_custom_call.1} parent=1 // loop_footer
      %s21 = sadd.s32 1, %s17
    $region7: #{tpu_custom_call.1} parent=1 // loop_footer_branch
      %16 = sbr.rel target = $region3
    $region8: #{tpu_custom_call.1} parent=1 // loop_exit
      _
    %3655 = vsyncpa [#allocation3], 1
    %s3656 = scalar_lea.sflag [#allocation3], 1
    %3657 = vsyncpa %s3656, 1
    %3658 = vsyncpa [#allocation5], 1
    %s3659 = scalar_lea.sflag [#allocation5], 1
    %3660 = vsyncpa %s3659, 1

</llo_original>
